<compile_context>
chip_gen: v5e
topology: v5e:2x2
jax: 0.10.0
libtpu: 0.0.40
codegen_flags: <defaults>
</compile_context>

<pallas_src>
import math

import jax
import jax.numpy as jnp
import numpy as np
from jax import lax
from jax.experimental import pallas as pl
from jax.experimental.pallas import tpu as pltpu

SELU_ALPHA = 1.6732632423543772848170429916717
SELU_SCALE = 1.0507009873554804934193349852946


def _selu(x):
    return SELU_SCALE * jnp.where(x > 0, x, SELU_ALPHA * (jnp.exp(x) - 1.0))


# ----------------------------------------------------------------------------
# Fused kernel: (multiplier ⊗ dec0) -> SELU -> [self-attention] x layers -> Linear
# ----------------------------------------------------------------------------
def make_fused_decoder_kernel(B, S, L, H, O, heads, layers):
    hd = H // heads
    inv_sqrt_hd = 1.0 / math.sqrt(hd)
    R = B * S
    f32 = jnp.float32

    def kernel(latent_ref, wf_ref, bf_ref, wqkv_ref, bqkv_ref,
               wo_ref, bo_ref, wl_ref, bl_ref, out_ref):
        lat = latent_ref[...]                                        # (B, L)

        # --- fused multiplier+dec0 (weights pre-multiplied host-side) ---
        # Row s*B + b  <-  latent[b] @ W_fused[s]   (s-major row order).
        h = jnp.concatenate(
            [jnp.dot(lat, wf_ref[s], preferred_element_type=f32) for s in range(S)],
            axis=0) + bf_ref[...]                                    # (R, H)
        h = _selu(h)

        # --- block-diagonal additive mask, built ONCE (hoisted out of loops) ---
        # In s-major order, rows of the same batch element share r % B.
        row = lax.broadcasted_iota(jnp.int32, (R, R), 0)
        col = lax.broadcasted_iota(jnp.int32, (R, R), 1)
        neg_mask = jnp.where((row % B) == (col % B), 0.0, -1e30).astype(f32)

        # --- self-attention layers ---
        for layer in range(layers):
            # one packed QKV projection per layer: (R, H) @ (H, 3H)
            qkv = (jnp.dot(h, wqkv_ref[layer], preferred_element_type=f32)
                   + bqkv_ref[layer])                                # (R, 3H)
            head_outs = []
            for hh in range(heads):
                q = qkv[:, hh * hd:(hh + 1) * hd]                    # (R, hd)
                k = qkv[:, H + hh * hd:H + (hh + 1) * hd]
                v = qkv[:, 2 * H + hh * hd:2 * H + (hh + 1) * hd]
                # one q@k.T over all B*S rows, cross-batch entries masked out
                scores = lax.dot_general(
                    q, k, (((1,), (1,)), ((), ())),
                    preferred_element_type=f32) * inv_sqrt_hd        # (R, R)
                scores = scores + neg_mask
                scores = scores - jnp.max(scores, axis=-1, keepdims=True)
                p_att = jnp.exp(scores)
                # exact divide (review correctness note re: approx reciprocal)
                p_att = p_att / jnp.sum(p_att, axis=-1, keepdims=True)
                head_outs.append(
                    jnp.dot(p_att, v, preferred_element_type=f32))   # (R, hd)
            o_all = jnp.concatenate(head_outs, axis=1)               # (R, H)
            h = (jnp.dot(o_all, wo_ref[layer], preferred_element_type=f32)
                 + bo_ref[layer])

        # --- final Linear, single dense store ---
        out_ref[...] = (jnp.dot(h, wl_ref[...], preferred_element_type=f32)
                        + bl_ref[...])                               # (R, O)

    return kernel


# ----------------------------------------------------------------------------
# Wrapper
# ----------------------------------------------------------------------------
def distribution_decoder_tx_forward(latent, p, *, set_size, heads, layers):
    B, L = latent.shape
    H = p["dec0_w"].shape[0]
    O = p["dec_last_w"].shape[0]
    S = set_size

    # Host-side weight prep (parameter-only; in real use done once).
    wm, bm = p["mult_w"], p["mult_b"]            # (S*L, L), (S*L,)
    w0t = p["dec0_w"].T                          # (L, H)
    # Fold multiplier into dec0:  h[b, s] = latent[b] @ W_fused[s] + b_fused[s]
    wf = jnp.stack([wm[s * L:(s + 1) * L, :].T @ w0t for s in range(S)])       # (S, L, H)
    bf = jnp.stack([bm[s * L:(s + 1) * L] @ w0t + p["dec0_b"] for s in range(S)])  # (S, H)
    bf_rows = jnp.repeat(bf, B, axis=0)          # (S*B, H), s-major row bias

    wqkv = jnp.stack([p[f"attn{l}_in_w"].T for l in range(layers)])            # (layers, H, 3H)
    bqkv = jnp.stack([p[f"attn{l}_in_b"][None, :] for l in range(layers)])     # (layers, 1, 3H)
    wo = jnp.stack([p[f"attn{l}_out_w"].T for l in range(layers)])             # (layers, H, H)
    bo = jnp.stack([p[f"attn{l}_out_b"][None, :] for l in range(layers)])      # (layers, 1, H)
    wl = p["dec_last_w"].T                       # (H, O)
    bl = p["dec_last_b"][None, :]                # (1, O)

    args = [latent, wf, bf_rows, wqkv, bqkv, wo, bo, wl, bl]

    vmem = pl.BlockSpec(memory_space=pltpu.MemorySpace.VMEM)
    kernel = make_fused_decoder_kernel(B, S, L, H, O, heads, layers)
    # Grid-less single call (one TC) — fine at toy sizes.  At production sizes:
    # add grid=(layers,) marked "arbitrary" with per-layer weight BlockSpecs
    # (streams weights for v7x's 64 MiB VMEM) and a parallel batch axis with
    # pltpu.CompilerParams(dimension_semantics=("parallel", ...)) for 2 TCs.
    out_smajor = pl.pallas_call(
        kernel,
        out_shape=jax.ShapeDtypeStruct((S * B, O), jnp.float32),
        in_specs=[vmem] * len(args),
        out_specs=vmem,
    )(*args)
    # Undo s-major row order (free leading-dim reshape + tiny transpose outside).
    return out_smajor.reshape(S, B, O).transpose(1, 0, 2)


# ----------------------------------------------------------------------------
# Pure-JAX reference (for correctness check)
# ----------------------------------------------------------------------------
def reference_forward(latent, p, *, set_size, heads, layers):
    B, L = latent.shape
    H = p["dec0_w"].shape[0]
    hd = H // heads

    expanded = latent @ p["mult_w"].T + p["mult_b"]
    x = expanded.reshape(B, set_size, L)
    h = x @ p["dec0_w"].T + p["dec0_b"]
    h = _selu(h)
    for l in range(layers):
        wqkv = p[f"attn{l}_in_w"]
        bqkv = p[f"attn{l}_in_b"]
        q = h @ wqkv[:H].T + bqkv[:H]
        k = h @ wqkv[H:2 * H].T + bqkv[H:2 * H]
        v = h @ wqkv[2 * H:].T + bqkv[2 * H:]
        qh = q.reshape(B, set_size, heads, hd)
        kh = k.reshape(B, set_size, heads, hd)
        vh = v.reshape(B, set_size, heads, hd)
        scores = jnp.einsum("bqnd,bknd->bnqk", qh, kh) / math.sqrt(hd)
        attn = jax.nn.softmax(scores, axis=-1)
        o = jnp.einsum("bnqk,bknd->bqnd", attn, vh).reshape(B, set_size, H)
        h = o @ p[f"attn{l}_out_w"].T + p[f"attn{l}_out_b"]
    return h @ p["dec_last_w"].T + p["dec_last_b"]


# ----------------------------------------------------------------------------
# Deterministic parameter init (PyTorch nn.Linear-style uniform bounds)
# ----------------------------------------------------------------------------
def init_params(key, latent_dim, out_dim, hidden_dim, set_size, layers):
    def lin(kw, kb, out_f, in_f):
        bound = 1.0 / math.sqrt(in_f)
        w = jax.random.uniform(kw, (out_f, in_f), jnp.float32, -bound, bound)
        b = jax.random.uniform(kb, (out_f,), jnp.float32, -bound, bound)
        return w, b

    keys = iter(jax.random.split(key, 6 + 4 * layers))
    p = {}
    p["mult_w"], p["mult_b"] = lin(next(keys), next(keys), latent_dim * set_size, latent_dim)
    p["dec0_w"], p["dec0_b"] = lin(next(keys), next(keys), hidden_dim, latent_dim)
    for l in range(layers):
        p[f"attn{l}_in_w"], p[f"attn{l}_in_b"] = lin(next(keys), next(keys), 3 * hidden_dim, hidden_dim)
        p[f"attn{l}_out_w"], p[f"attn{l}_out_b"] = lin(next(keys), next(keys), hidden_dim, hidden_dim)
    p["dec_last_w"], p["dec_last_b"] = lin(next(keys), next(keys), out_dim, hidden_dim)
    return p


if __name__ == "__main__":
    LATENT_DIM, OUT_DIM, HIDDEN_DIM, SET_SIZE, LAYERS, HEADS = 8, 16, 32, 8, 2, 4
    BATCH = 2

    root = jax.random.PRNGKey(0)
    k_params, k_latent = jax.random.split(root)
    params = init_params(k_params, LATENT_DIM, OUT_DIM, HIDDEN_DIM, SET_SIZE, LAYERS)
    latent = jax.random.normal(k_latent, (BATCH, LATENT_DIM), jnp.float32)

    out = distribution_decoder_tx_forward(
        latent, params, set_size=SET_SIZE, heads=HEADS, layers=LAYERS)
    out = jax.block_until_ready(out)

    ref = reference_forward(
        latent, params, set_size=SET_SIZE, heads=HEADS, layers=LAYERS)
    ref = jax.block_until_ready(ref)

    assert out.shape == (BATCH, SET_SIZE, OUT_DIM), out.shape
    np.testing.assert_allclose(np.asarray(out), np.asarray(ref), rtol=1e-3, atol=1e-3)
    print("KERNEL_OK")
</pallas_src>

<mosaic_0001>
module attributes {stable_mosaic.version = 11 : i64} {
  func.func @kernel(%arg0: memref<2x8xf32, #tpu.memory_space<vmem>>, %arg1: memref<8x8x32xf32, #tpu.memory_space<vmem>>, %arg2: memref<16x32xf32, #tpu.memory_space<vmem>>, %arg3: memref<2x32x96xf32, #tpu.memory_space<vmem>>, %arg4: memref<2x1x96xf32, #tpu.memory_space<vmem>>, %arg5: memref<2x32x32xf32, #tpu.memory_space<vmem>>, %arg6: memref<2x1x32xf32, #tpu.memory_space<vmem>>, %arg7: memref<32x16xf32, #tpu.memory_space<vmem>>, %arg8: memref<1x16xf32, #tpu.memory_space<vmem>>, %arg9: memref<16x16xf32, #tpu.memory_space<vmem>>) attributes {dimension_semantics = [], scalar_prefetch = 0 : i64, scratch_operands = 0 : i64, tpu.core_type = #tpu.core_type<tc>} {
    %c0 = arith.constant 0 : index
    %c0_0 = arith.constant 0 : index
    %0 = vector.load %arg0[%c0, %c0_0] : memref<2x8xf32, #tpu.memory_space<vmem>>, vector<2x8xf32>
    %c0_1 = arith.constant 0 : index
    %c0_2 = arith.constant 0 : index
    %c0_3 = arith.constant 0 : index
    %1 = vector.load %arg1[%c0_1, %c0_2, %c0_3] : memref<8x8x32xf32, #tpu.memory_space<vmem>>, vector<1x8x32xf32>
    %2 = vector.shape_cast %1 : vector<1x8x32xf32> to vector<8x32xf32>
    %cst = arith.constant dense<0.000000e+00> : vector<2x32xf32>
    %3 = tpu.matmul %0, %2, %cst {dimension_numbers = #tpu.dot_dimension_numbers<[1], [0], [0], [1], [0, 0, 1, 1], [], []>} : vector<2x8xf32>, vector<8x32xf32>, vector<2x32xf32> -> vector<2x32xf32>
    %c1 = arith.constant 1 : index
    %c0_4 = arith.constant 0 : index
    %c0_5 = arith.constant 0 : index
    %4 = vector.load %arg1[%c1, %c0_4, %c0_5] : memref<8x8x32xf32, #tpu.memory_space<vmem>>, vector<1x8x32xf32>
    %5 = vector.shape_cast %4 : vector<1x8x32xf32> to vector<8x32xf32>
    %cst_6 = arith.constant dense<0.000000e+00> : vector<2x32xf32>
    %6 = tpu.matmul %0, %5, %cst_6 {dimension_numbers = #tpu.dot_dimension_numbers<[1], [0], [0], [1], [0, 0, 1, 1], [], []>} : vector<2x8xf32>, vector<8x32xf32>, vector<2x32xf32> -> vector<2x32xf32>
    %c2 = arith.constant 2 : index
    %c0_7 = arith.constant 0 : index
    %c0_8 = arith.constant 0 : index
    %7 = vector.load %arg1[%c2, %c0_7, %c0_8] : memref<8x8x32xf32, #tpu.memory_space<vmem>>, vector<1x8x32xf32>
    %8 = vector.shape_cast %7 : vector<1x8x32xf32> to vector<8x32xf32>
    %cst_9 = arith.constant dense<0.000000e+00> : vector<2x32xf32>
    %9 = tpu.matmul %0, %8, %cst_9 {dimension_numbers = #tpu.dot_dimension_numbers<[1], [0], [0], [1], [0, 0, 1, 1], [], []>} : vector<2x8xf32>, vector<8x32xf32>, vector<2x32xf32> -> vector<2x32xf32>
    %c3 = arith.constant 3 : index
    %c0_10 = arith.constant 0 : index
    %c0_11 = arith.constant 0 : index
    %10 = vector.load %arg1[%c3, %c0_10, %c0_11] : memref<8x8x32xf32, #tpu.memory_space<vmem>>, vector<1x8x32xf32>
    %11 = vector.shape_cast %10 : vector<1x8x32xf32> to vector<8x32xf32>
    %cst_12 = arith.constant dense<0.000000e+00> : vector<2x32xf32>
    %12 = tpu.matmul %0, %11, %cst_12 {dimension_numbers = #tpu.dot_dimension_numbers<[1], [0], [0], [1], [0, 0, 1, 1], [], []>} : vector<2x8xf32>, vector<8x32xf32>, vector<2x32xf32> -> vector<2x32xf32>
    %c4 = arith.constant 4 : index
    %c0_13 = arith.constant 0 : index
    %c0_14 = arith.constant 0 : index
    %13 = vector.load %arg1[%c4, %c0_13, %c0_14] : memref<8x8x32xf32, #tpu.memory_space<vmem>>, vector<1x8x32xf32>
    %14 = vector.shape_cast %13 : vector<1x8x32xf32> to vector<8x32xf32>
    %cst_15 = arith.constant dense<0.000000e+00> : vector<2x32xf32>
    %15 = tpu.matmul %0, %14, %cst_15 {dimension_numbers = #tpu.dot_dimension_numbers<[1], [0], [0], [1], [0, 0, 1, 1], [], []>} : vector<2x8xf32>, vector<8x32xf32>, vector<2x32xf32> -> vector<2x32xf32>
    %c5 = arith.constant 5 : index
    %c0_16 = arith.constant 0 : index
    %c0_17 = arith.constant 0 : index
    %16 = vector.load %arg1[%c5, %c0_16, %c0_17] : memref<8x8x32xf32, #tpu.memory_space<vmem>>, vector<1x8x32xf32>
    %17 = vector.shape_cast %16 : vector<1x8x32xf32> to vector<8x32xf32>
    %cst_18 = arith.constant dense<0.000000e+00> : vector<2x32xf32>
    %18 = tpu.matmul %0, %17, %cst_18 {dimension_numbers = #tpu.dot_dimension_numbers<[1], [0], [0], [1], [0, 0, 1, 1], [], []>} : vector<2x8xf32>, vector<8x32xf32>, vector<2x32xf32> -> vector<2x32xf32>
    %c6 = arith.constant 6 : index
    %c0_19 = arith.constant 0 : index
    %c0_20 = arith.constant 0 : index
    %19 = vector.load %arg1[%c6, %c0_19, %c0_20] : memref<8x8x32xf32, #tpu.memory_space<vmem>>, vector<1x8x32xf32>
    %20 = vector.shape_cast %19 : vector<1x8x32xf32> to vector<8x32xf32>
    %cst_21 = arith.constant dense<0.000000e+00> : vector<2x32xf32>
    %21 = tpu.matmul %0, %20, %cst_21 {dimension_numbers = #tpu.dot_dimension_numbers<[1], [0], [0], [1], [0, 0, 1, 1], [], []>} : vector<2x8xf32>, vector<8x32xf32>, vector<2x32xf32> -> vector<2x32xf32>
    %c7 = arith.constant 7 : index
    %c0_22 = arith.constant 0 : index
    %c0_23 = arith.constant 0 : index
    %22 = vector.load %arg1[%c7, %c0_22, %c0_23] : memref<8x8x32xf32, #tpu.memory_space<vmem>>, vector<1x8x32xf32>
    %23 = vector.shape_cast %22 : vector<1x8x32xf32> to vector<8x32xf32>
    %cst_24 = arith.constant dense<0.000000e+00> : vector<2x32xf32>
    %24 = tpu.matmul %0, %23, %cst_24 {dimension_numbers = #tpu.dot_dimension_numbers<[1], [0], [0], [1], [0, 0, 1, 1], [], []>} : vector<2x8xf32>, vector<8x32xf32>, vector<2x32xf32> -> vector<2x32xf32>
    %25 = tpu.concatenate %3, %6, %9, %12, %15, %18, %21, %24 in 0 : vector<2x32xf32>, vector<2x32xf32>, vector<2x32xf32>, vector<2x32xf32>, vector<2x32xf32>, vector<2x32xf32>, vector<2x32xf32>, vector<2x32xf32> -> vector<16x32xf32>
    %c0_25 = arith.constant 0 : index
    %c0_26 = arith.constant 0 : index
    %26 = vector.load %arg2[%c0_25, %c0_26] : memref<16x32xf32, #tpu.memory_space<vmem>>, vector<16x32xf32>
    %27 = arith.addf %25, %26 : vector<16x32xf32>
    %cst_27 = arith.constant 0.000000e+00 : f32
    %28 = vector.broadcast %cst_27 : f32 to vector<16x32xf32>
    %29 = arith.cmpf ogt, %27, %28 : vector<16x32xf32>
    %30 = math.exp %27 : vector<16x32xf32>
    %cst_28 = arith.constant 1.000000e+00 : f32
    %31 = vector.broadcast %cst_28 : f32 to vector<16x32xf32>
    %32 = arith.subf %30, %31 : vector<16x32xf32>
    %cst_29 = arith.constant 1.67326319 : f32
    %33 = vector.broadcast %cst_29 : f32 to vector<16x32xf32>
    %34 = arith.mulf %33, %32 : vector<16x32xf32>
    %35 = arith.select %29, %27, %34 : vector<16x32xi1>, vector<16x32xf32>
    %cst_30 = arith.constant 1.05070102 : f32
    %36 = vector.broadcast %cst_30 : f32 to vector<16x32xf32>
    %37 = arith.mulf %36, %35 : vector<16x32xf32>
    %38 = tpu.iota {dimensions = array<i32: 0>} : vector<16x16xi32>
    %39 = tpu.iota {dimensions = array<i32: 1>} : vector<16x16xi32>
    %c2_i32 = arith.constant 2 : i32
    %c0_i32 = arith.constant 0 : i32
    %40 = arith.cmpi eq, %c2_i32, %c0_i32 : i32
    %c1_i32 = arith.constant 1 : i32
    %41 = arith.select %40, %c1_i32, %c2_i32 : i32
    %42 = vector.broadcast %41 : i32 to vector<16x16xi32>
    %43 = arith.remsi %38, %42 : vector<16x16xi32>
    %c0_i32_31 = arith.constant 0 : i32
    %44 = vector.broadcast %c0_i32_31 : i32 to vector<16x16xi32>
    %45 = arith.cmpi ne, %43, %44 : vector<16x16xi32>
    %c0_i32_32 = arith.constant 0 : i32
    %46 = vector.broadcast %c0_i32_32 : i32 to vector<16x16xi32>
    %47 = arith.cmpi slt, %43, %46 : vector<16x16xi32>
    %c0_i32_33 = arith.constant 0 : i32
    %48 = arith.cmpi slt, %41, %c0_i32_33 : i32
    %49 = vector.broadcast %48 : i1 to vector<16x16xi1>
    %50 = vector.broadcast %49 : vector<16x16xi1> to vector<16x16xi1>
    %51 = arith.xori %47, %50 : vector<16x16xi1>
    %52 = arith.andi %51, %45 : vector<16x16xi1>
    %53 = vector.broadcast %41 : i32 to vector<16x16xi32>
    %54 = arith.addi %43, %53 : vector<16x16xi32>
    %55 = arith.select %52, %54, %43 : vector<16x16xi1>, vector<16x16xi32>
    %c2_i32_34 = arith.constant 2 : i32
    %c0_i32_35 = arith.constant 0 : i32
    %56 = arith.cmpi eq, %c2_i32_34, %c0_i32_35 : i32
    %c1_i32_36 = arith.constant 1 : i32
    %57 = arith.select %56, %c1_i32_36, %c2_i32_34 : i32
    %58 = vector.broadcast %57 : i32 to vector<16x16xi32>
    %59 = arith.remsi %39, %58 : vector<16x16xi32>
    %c0_i32_37 = arith.constant 0 : i32
    %60 = vector.broadcast %c0_i32_37 : i32 to vector<16x16xi32>
    %61 = arith.cmpi ne, %59, %60 : vector<16x16xi32>
    %c0_i32_38 = arith.constant 0 : i32
    %62 = vector.broadcast %c0_i32_38 : i32 to vector<16x16xi32>
    %63 = arith.cmpi slt, %59, %62 : vector<16x16xi32>
    %c0_i32_39 = arith.constant 0 : i32
    %64 = arith.cmpi slt, %57, %c0_i32_39 : i32
    %65 = vector.broadcast %64 : i1 to vector<16x16xi1>
    %66 = vector.broadcast %65 : vector<16x16xi1> to vector<16x16xi1>
    %67 = arith.xori %63, %66 : vector<16x16xi1>
    %68 = arith.andi %67, %61 : vector<16x16xi1>
    %69 = vector.broadcast %57 : i32 to vector<16x16xi32>
    %70 = arith.addi %59, %69 : vector<16x16xi32>
    %71 = arith.select %68, %70, %59 : vector<16x16xi1>, vector<16x16xi32>
    %72 = arith.cmpi eq, %55, %71 : vector<16x16xi32>
    %cst_40 = arith.constant 0.000000e+00 : f32
    %cst_41 = arith.constant -1.000000e+30 : f32
    %73 = vector.broadcast %cst_40 : f32 to vector<16x16xf32>
    %74 = vector.broadcast %cst_41 : f32 to vector<16x16xf32>
    %75 = arith.select %72, %73, %74 : vector<16x16xi1>, vector<16x16xf32>
    %c0_42 = arith.constant 0 : index
    %c0_43 = arith.constant 0 : index
    %c0_44 = arith.constant 0 : index
    %76 = vector.load %arg3[%c0_42, %c0_43, %c0_44] : memref<2x32x96xf32, #tpu.memory_space<vmem>>, vector<1x32x96xf32>
    %77 = vector.shape_cast %76 : vector<1x32x96xf32> to vector<32x96xf32>
    %cst_45 = arith.constant dense<0.000000e+00> : vector<16x96xf32>
    %78 = tpu.matmul %37, %77, %cst_45 {dimension_numbers = #tpu.dot_dimension_numbers<[1], [0], [0], [1], [0, 0, 1, 1], [], []>} : vector<16x32xf32>, vector<32x96xf32>, vector<16x96xf32> -> vector<16x96xf32>
    %c0_46 = arith.constant 0 : index
    %c0_47 = arith.constant 0 : index
    %c0_48 = arith.constant 0 : index
    %79 = vector.load %arg4[%c0_46, %c0_47, %c0_48] : memref<2x1x96xf32, #tpu.memory_space<vmem>>, vector<1x1x96xf32>
    %80 = vector.shape_cast %79 : vector<1x1x96xf32> to vector<1x96xf32>
    %81 = vector.broadcast %80 : vector<1x96xf32> to vector<16x96xf32>
    %82 = arith.addf %78, %81 : vector<16x96xf32>
    %83 = vector.extract_strided_slice %82 {offsets = [0, 0], sizes = [16, 8], strides = [1, 1]} : vector<16x96xf32> to vector<16x8xf32>
    %84 = vector.extract_strided_slice %82 {offsets = [0, 32], sizes = [16, 8], strides = [1, 1]} : vector<16x96xf32> to vector<16x8xf32>
    %85 = vector.extract_strided_slice %82 {offsets = [0, 64], sizes = [16, 8], strides = [1, 1]} : vector<16x96xf32> to vector<16x8xf32>
    %cst_49 = arith.constant dense<0.000000e+00> : vector<16x16xf32>
    %86 = tpu.matmul %83, %84, %cst_49 {dimension_numbers = #tpu.dot_dimension_numbers<[1], [1], [0], [0], [0, 0, 1, 0], [], []>} : vector<16x8xf32>, vector<16x8xf32>, vector<16x16xf32> -> vector<16x16xf32>
    %cst_50 = arith.constant 0.353553385 : f32
    %87 = vector.broadcast %cst_50 : f32 to vector<16x16xf32>
    %88 = arith.mulf %86, %87 : vector<16x16xf32>
    %89 = arith.addf %88, %75 : vector<16x16xf32>
    %cst_51 = arith.constant dense<0xFF800000> : vector<16xf32>
    %90 = vector.multi_reduction <maximumf>, %89, %cst_51 [1] : vector<16x16xf32> to vector<16xf32>
    %91 = vector.shape_cast %90 : vector<16xf32> to vector<16x1xf32>
    %92 = vector.broadcast %91 : vector<16x1xf32> to vector<16x16xf32>
    %93 = arith.subf %89, %92 : vector<16x16xf32>
    %94 = math.exp %93 : vector<16x16xf32>
    %cst_52 = arith.constant dense<0.000000e+00> : vector<16xf32>
    %95 = vector.multi_reduction <add>, %94, %cst_52 [1] : vector<16x16xf32> to vector<16xf32>
    %96 = vector.shape_cast %95 : vector<16xf32> to vector<16x1xf32>
    %97 = vector.broadcast %96 : vector<16x1xf32> to vector<16x16xf32>
    %98 = arith.divf %94, %97 : vector<16x16xf32>
    %cst_53 = arith.constant dense<0.000000e+00> : vector<16x8xf32>
    %99 = tpu.matmul %98, %85, %cst_53 {dimension_numbers = #tpu.dot_dimension_numbers<[1], [0], [0], [1], [0, 0, 1, 1], [], []>} : vector<16x16xf32>, vector<16x8xf32>, vector<16x8xf32> -> vector<16x8xf32>
    %100 = vector.extract_strided_slice %82 {offsets = [0, 8], sizes = [16, 8], strides = [1, 1]} : vector<16x96xf32> to vector<16x8xf32>
    %101 = vector.extract_strided_slice %82 {offsets = [0, 40], sizes = [16, 8], strides = [1, 1]} : vector<16x96xf32> to vector<16x8xf32>
    %102 = vector.extract_strided_slice %82 {offsets = [0, 72], sizes = [16, 8], strides = [1, 1]} : vector<16x96xf32> to vector<16x8xf32>
    %cst_54 = arith.constant dense<0.000000e+00> : vector<16x16xf32>
    %103 = tpu.matmul %100, %101, %cst_54 {dimension_numbers = #tpu.dot_dimension_numbers<[1], [1], [0], [0], [0, 0, 1, 0], [], []>} : vector<16x8xf32>, vector<16x8xf32>, vector<16x16xf32> -> vector<16x16xf32>
    %cst_55 = arith.constant 0.353553385 : f32
    %104 = vector.broadcast %cst_55 : f32 to vector<16x16xf32>
    %105 = arith.mulf %103, %104 : vector<16x16xf32>
    %106 = arith.addf %105, %75 : vector<16x16xf32>
    %cst_56 = arith.constant dense<0xFF800000> : vector<16xf32>
    %107 = vector.multi_reduction <maximumf>, %106, %cst_56 [1] : vector<16x16xf32> to vector<16xf32>
    %108 = vector.shape_cast %107 : vector<16xf32> to vector<16x1xf32>
    %109 = vector.broadcast %108 : vector<16x1xf32> to vector<16x16xf32>
    %110 = arith.subf %106, %109 : vector<16x16xf32>
    %111 = math.exp %110 : vector<16x16xf32>
    %cst_57 = arith.constant dense<0.000000e+00> : vector<16xf32>
    %112 = vector.multi_reduction <add>, %111, %cst_57 [1] : vector<16x16xf32> to vector<16xf32>
    %113 = vector.shape_cast %112 : vector<16xf32> to vector<16x1xf32>
    %114 = vector.broadcast %113 : vector<16x1xf32> to vector<16x16xf32>
    %115 = arith.divf %111, %114 : vector<16x16xf32>
    %cst_58 = arith.constant dense<0.000000e+00> : vector<16x8xf32>
    %116 = tpu.matmul %115, %102, %cst_58 {dimension_numbers = #tpu.dot_dimension_numbers<[1], [0], [0], [1], [0, 0, 1, 1], [], []>} : vector<16x16xf32>, vector<16x8xf32>, vector<16x8xf32> -> vector<16x8xf32>
    %117 = vector.extract_strided_slice %82 {offsets = [0, 16], sizes = [16, 8], strides = [1, 1]} : vector<16x96xf32> to vector<16x8xf32>
    %118 = vector.extract_strided_slice %82 {offsets = [0, 48], sizes = [16, 8], strides = [1, 1]} : vector<16x96xf32> to vector<16x8xf32>
    %119 = vector.extract_strided_slice %82 {offsets = [0, 80], sizes = [16, 8], strides = [1, 1]} : vector<16x96xf32> to vector<16x8xf32>
    %cst_59 = arith.constant dense<0.000000e+00> : vector<16x16xf32>
    %120 = tpu.matmul %117, %118, %cst_59 {dimension_numbers = #tpu.dot_dimension_numbers<[1], [1], [0], [0], [0, 0, 1, 0], [], []>} : vector<16x8xf32>, vector<16x8xf32>, vector<16x16xf32> -> vector<16x16xf32>
    %cst_60 = arith.constant 0.353553385 : f32
    %121 = vector.broadcast %cst_60 : f32 to vector<16x16xf32>
    %122 = arith.mulf %120, %121 : vector<16x16xf32>
    %123 = arith.addf %122, %75 : vector<16x16xf32>
    %cst_61 = arith.constant dense<0xFF800000> : vector<16xf32>
    %124 = vector.multi_reduction <maximumf>, %123, %cst_61 [1] : vector<16x16xf32> to vector<16xf32>
    %125 = vector.shape_cast %124 : vector<16xf32> to vector<16x1xf32>
    %126 = vector.broadcast %125 : vector<16x1xf32> to vector<16x16xf32>
    %127 = arith.subf %123, %126 : vector<16x16xf32>
    %128 = math.exp %127 : vector<16x16xf32>
    %cst_62 = arith.constant dense<0.000000e+00> : vector<16xf32>
    %129 = vector.multi_reduction <add>, %128, %cst_62 [1] : vector<16x16xf32> to vector<16xf32>
    %130 = vector.shape_cast %129 : vector<16xf32> to vector<16x1xf32>
    %131 = vector.broadcast %130 : vector<16x1xf32> to vector<16x16xf32>
    %132 = arith.divf %128, %131 : vector<16x16xf32>
    %cst_63 = arith.constant dense<0.000000e+00> : vector<16x8xf32>
    %133 = tpu.matmul %132, %119, %cst_63 {dimension_numbers = #tpu.dot_dimension_numbers<[1], [0], [0], [1], [0, 0, 1, 1], [], []>} : vector<16x16xf32>, vector<16x8xf32>, vector<16x8xf32> -> vector<16x8xf32>
    %134 = vector.extract_strided_slice %82 {offsets = [0, 24], sizes = [16, 8], strides = [1, 1]} : vector<16x96xf32> to vector<16x8xf32>
    %135 = vector.extract_strided_slice %82 {offsets = [0, 56], sizes = [16, 8], strides = [1, 1]} : vector<16x96xf32> to vector<16x8xf32>
    %136 = vector.extract_strided_slice %82 {offsets = [0, 88], sizes = [16, 8], strides = [1, 1]} : vector<16x96xf32> to vector<16x8xf32>
    %cst_64 = arith.constant dense<0.000000e+00> : vector<16x16xf32>
    %137 = tpu.matmul %134, %135, %cst_64 {dimension_numbers = #tpu.dot_dimension_numbers<[1], [1], [0], [0], [0, 0, 1, 0], [], []>} : vector<16x8xf32>, vector<16x8xf32>, vector<16x16xf32> -> vector<16x16xf32>
    %cst_65 = arith.constant 0.353553385 : f32
    %138 = vector.broadcast %cst_65 : f32 to vector<16x16xf32>
    %139 = arith.mulf %137, %138 : vector<16x16xf32>
    %140 = arith.addf %139, %75 : vector<16x16xf32>
    %cst_66 = arith.constant dense<0xFF800000> : vector<16xf32>
    %141 = vector.multi_reduction <maximumf>, %140, %cst_66 [1] : vector<16x16xf32> to vector<16xf32>
    %142 = vector.shape_cast %141 : vector<16xf32> to vector<16x1xf32>
    %143 = vector.broadcast %142 : vector<16x1xf32> to vector<16x16xf32>
    %144 = arith.subf %140, %143 : vector<16x16xf32>
    %145 = math.exp %144 : vector<16x16xf32>
    %cst_67 = arith.constant dense<0.000000e+00> : vector<16xf32>
    %146 = vector.multi_reduction <add>, %145, %cst_67 [1] : vector<16x16xf32> to vector<16xf32>
    %147 = vector.shape_cast %146 : vector<16xf32> to vector<16x1xf32>
    %148 = vector.broadcast %147 : vector<16x1xf32> to vector<16x16xf32>
    %149 = arith.divf %145, %148 : vector<16x16xf32>
    %cst_68 = arith.constant dense<0.000000e+00> : vector<16x8xf32>
    %150 = tpu.matmul %149, %136, %cst_68 {dimension_numbers = #tpu.dot_dimension_numbers<[1], [0], [0], [1], [0, 0, 1, 1], [], []>} : vector<16x16xf32>, vector<16x8xf32>, vector<16x8xf32> -> vector<16x8xf32>
    %151 = tpu.concatenate %99, %116, %133, %150 in 1 : vector<16x8xf32>, vector<16x8xf32>, vector<16x8xf32>, vector<16x8xf32> -> vector<16x32xf32>
    %c0_69 = arith.constant 0 : index
    %c0_70 = arith.constant 0 : index
    %c0_71 = arith.constant 0 : index
    %152 = vector.load %arg5[%c0_69, %c0_70, %c0_71] : memref<2x32x32xf32, #tpu.memory_space<vmem>>, vector<1x32x32xf32>
    %153 = vector.shape_cast %152 : vector<1x32x32xf32> to vector<32x32xf32>
    %cst_72 = arith.constant dense<0.000000e+00> : vector<16x32xf32>
    %154 = tpu.matmul %151, %153, %cst_72 {dimension_numbers = #tpu.dot_dimension_numbers<[1], [0], [0], [1], [0, 0, 1, 1], [], []>} : vector<16x32xf32>, vector<32x32xf32>, vector<16x32xf32> -> vector<16x32xf32>
    %c0_73 = arith.constant 0 : index
    %c0_74 = arith.constant 0 : index
    %c0_75 = arith.constant 0 : index
    %155 = vector.load %arg6[%c0_73, %c0_74, %c0_75] : memref<2x1x32xf32, #tpu.memory_space<vmem>>, vector<1x1x32xf32>
    %156 = vector.shape_cast %155 : vector<1x1x32xf32> to vector<1x32xf32>
    %157 = vector.broadcast %156 : vector<1x32xf32> to vector<16x32xf32>
    %158 = arith.addf %154, %157 : vector<16x32xf32>
    %c1_76 = arith.constant 1 : index
    %c0_77 = arith.constant 0 : index
    %c0_78 = arith.constant 0 : index
    %159 = vector.load %arg3[%c1_76, %c0_77, %c0_78] : memref<2x32x96xf32, #tpu.memory_space<vmem>>, vector<1x32x96xf32>
    %160 = vector.shape_cast %159 : vector<1x32x96xf32> to vector<32x96xf32>
    %cst_79 = arith.constant dense<0.000000e+00> : vector<16x96xf32>
    %161 = tpu.matmul %158, %160, %cst_79 {dimension_numbers = #tpu.dot_dimension_numbers<[1], [0], [0], [1], [0, 0, 1, 1], [], []>} : vector<16x32xf32>, vector<32x96xf32>, vector<16x96xf32> -> vector<16x96xf32>
    %c1_80 = arith.constant 1 : index
    %c0_81 = arith.constant 0 : index
    %c0_82 = arith.constant 0 : index
    %162 = vector.load %arg4[%c1_80, %c0_81, %c0_82] : memref<2x1x96xf32, #tpu.memory_space<vmem>>, vector<1x1x96xf32>
    %163 = vector.shape_cast %162 : vector<1x1x96xf32> to vector<1x96xf32>
    %164 = vector.broadcast %163 : vector<1x96xf32> to vector<16x96xf32>
    %165 = arith.addf %161, %164 : vector<16x96xf32>
    %166 = vector.extract_strided_slice %165 {offsets = [0, 0], sizes = [16, 8], strides = [1, 1]} : vector<16x96xf32> to vector<16x8xf32>
    %167 = vector.extract_strided_slice %165 {offsets = [0, 32], sizes = [16, 8], strides = [1, 1]} : vector<16x96xf32> to vector<16x8xf32>
    %168 = vector.extract_strided_slice %165 {offsets = [0, 64], sizes = [16, 8], strides = [1, 1]} : vector<16x96xf32> to vector<16x8xf32>
    %cst_83 = arith.constant dense<0.000000e+00> : vector<16x16xf32>
    %169 = tpu.matmul %166, %167, %cst_83 {dimension_numbers = #tpu.dot_dimension_numbers<[1], [1], [0], [0], [0, 0, 1, 0], [], []>} : vector<16x8xf32>, vector<16x8xf32>, vector<16x16xf32> -> vector<16x16xf32>
    %cst_84 = arith.constant 0.353553385 : f32
    %170 = vector.broadcast %cst_84 : f32 to vector<16x16xf32>
    %171 = arith.mulf %169, %170 : vector<16x16xf32>
    %172 = arith.addf %171, %75 : vector<16x16xf32>
    %cst_85 = arith.constant dense<0xFF800000> : vector<16xf32>
    %173 = vector.multi_reduction <maximumf>, %172, %cst_85 [1] : vector<16x16xf32> to vector<16xf32>
    %174 = vector.shape_cast %173 : vector<16xf32> to vector<16x1xf32>
    %175 = vector.broadcast %174 : vector<16x1xf32> to vector<16x16xf32>
    %176 = arith.subf %172, %175 : vector<16x16xf32>
    %177 = math.exp %176 : vector<16x16xf32>
    %cst_86 = arith.constant dense<0.000000e+00> : vector<16xf32>
    %178 = vector.multi_reduction <add>, %177, %cst_86 [1] : vector<16x16xf32> to vector<16xf32>
    %179 = vector.shape_cast %178 : vector<16xf32> to vector<16x1xf32>
    %180 = vector.broadcast %179 : vector<16x1xf32> to vector<16x16xf32>
    %181 = arith.divf %177, %180 : vector<16x16xf32>
    %cst_87 = arith.constant dense<0.000000e+00> : vector<16x8xf32>
    %182 = tpu.matmul %181, %168, %cst_87 {dimension_numbers = #tpu.dot_dimension_numbers<[1], [0], [0], [1], [0, 0, 1, 1], [], []>} : vector<16x16xf32>, vector<16x8xf32>, vector<16x8xf32> -> vector<16x8xf32>
    %183 = vector.extract_strided_slice %165 {offsets = [0, 8], sizes = [16, 8], strides = [1, 1]} : vector<16x96xf32> to vector<16x8xf32>
    %184 = vector.extract_strided_slice %165 {offsets = [0, 40], sizes = [16, 8], strides = [1, 1]} : vector<16x96xf32> to vector<16x8xf32>
    %185 = vector.extract_strided_slice %165 {offsets = [0, 72], sizes = [16, 8], strides = [1, 1]} : vector<16x96xf32> to vector<16x8xf32>
    %cst_88 = arith.constant dense<0.000000e+00> : vector<16x16xf32>
    %186 = tpu.matmul %183, %184, %cst_88 {dimension_numbers = #tpu.dot_dimension_numbers<[1], [1], [0], [0], [0, 0, 1, 0], [], []>} : vector<16x8xf32>, vector<16x8xf32>, vector<16x16xf32> -> vector<16x16xf32>
    %cst_89 = arith.constant 0.353553385 : f32
    %187 = vector.broadcast %cst_89 : f32 to vector<16x16xf32>
    %188 = arith.mulf %186, %187 : vector<16x16xf32>
    %189 = arith.addf %188, %75 : vector<16x16xf32>
    %cst_90 = arith.constant dense<0xFF800000> : vector<16xf32>
    %190 = vector.multi_reduction <maximumf>, %189, %cst_90 [1] : vector<16x16xf32> to vector<16xf32>
    %191 = vector.shape_cast %190 : vector<16xf32> to vector<16x1xf32>
    %192 = vector.broadcast %191 : vector<16x1xf32> to vector<16x16xf32>
    %193 = arith.subf %189, %192 : vector<16x16xf32>
    %194 = math.exp %193 : vector<16x16xf32>
    %cst_91 = arith.constant dense<0.000000e+00> : vector<16xf32>
    %195 = vector.multi_reduction <add>, %194, %cst_91 [1] : vector<16x16xf32> to vector<16xf32>
    %196 = vector.shape_cast %195 : vector<16xf32> to vector<16x1xf32>
    %197 = vector.broadcast %196 : vector<16x1xf32> to vector<16x16xf32>
    %198 = arith.divf %194, %197 : vector<16x16xf32>
    %cst_92 = arith.constant dense<0.000000e+00> : vector<16x8xf32>
    %199 = tpu.matmul %198, %185, %cst_92 {dimension_numbers = #tpu.dot_dimension_numbers<[1], [0], [0], [1], [0, 0, 1, 1], [], []>} : vector<16x16xf32>, vector<16x8xf32>, vector<16x8xf32> -> vector<16x8xf32>
    %200 = vector.extract_strided_slice %165 {offsets = [0, 16], sizes = [16, 8], strides = [1, 1]} : vector<16x96xf32> to vector<16x8xf32>
    %201 = vector.extract_strided_slice %165 {offsets = [0, 48], sizes = [16, 8], strides = [1, 1]} : vector<16x96xf32> to vector<16x8xf32>
    %202 = vector.extract_strided_slice %165 {offsets = [0, 80], sizes = [16, 8], strides = [1, 1]} : vector<16x96xf32> to vector<16x8xf32>
    %cst_93 = arith.constant dense<0.000000e+00> : vector<16x16xf32>
    %203 = tpu.matmul %200, %201, %cst_93 {dimension_numbers = #tpu.dot_dimension_numbers<[1], [1], [0], [0], [0, 0, 1, 0], [], []>} : vector<16x8xf32>, vector<16x8xf32>, vector<16x16xf32> -> vector<16x16xf32>
    %cst_94 = arith.constant 0.353553385 : f32
    %204 = vector.broadcast %cst_94 : f32 to vector<16x16xf32>
    %205 = arith.mulf %203, %204 : vector<16x16xf32>
    %206 = arith.addf %205, %75 : vector<16x16xf32>
    %cst_95 = arith.constant dense<0xFF800000> : vector<16xf32>
    %207 = vector.multi_reduction <maximumf>, %206, %cst_95 [1] : vector<16x16xf32> to vector<16xf32>
    %208 = vector.shape_cast %207 : vector<16xf32> to vector<16x1xf32>
    %209 = vector.broadcast %208 : vector<16x1xf32> to vector<16x16xf32>
    %210 = arith.subf %206, %209 : vector<16x16xf32>
    %211 = math.exp %210 : vector<16x16xf32>
    %cst_96 = arith.constant dense<0.000000e+00> : vector<16xf32>
    %212 = vector.multi_reduction <add>, %211, %cst_96 [1] : vector<16x16xf32> to vector<16xf32>
    %213 = vector.shape_cast %212 : vector<16xf32> to vector<16x1xf32>
    %214 = vector.broadcast %213 : vector<16x1xf32> to vector<16x16xf32>
    %215 = arith.divf %211, %214 : vector<16x16xf32>
    %cst_97 = arith.constant dense<0.000000e+00> : vector<16x8xf32>
    %216 = tpu.matmul %215, %202, %cst_97 {dimension_numbers = #tpu.dot_dimension_numbers<[1], [0], [0], [1], [0, 0, 1, 1], [], []>} : vector<16x16xf32>, vector<16x8xf32>, vector<16x8xf32> -> vector<16x8xf32>
    %217 = vector.extract_strided_slice %165 {offsets = [0, 24], sizes = [16, 8], strides = [1, 1]} : vector<16x96xf32> to vector<16x8xf32>
    %218 = vector.extract_strided_slice %165 {offsets = [0, 56], sizes = [16, 8], strides = [1, 1]} : vector<16x96xf32> to vector<16x8xf32>
    %219 = vector.extract_strided_slice %165 {offsets = [0, 88], sizes = [16, 8], strides = [1, 1]} : vector<16x96xf32> to vector<16x8xf32>
    %cst_98 = arith.constant dense<0.000000e+00> : vector<16x16xf32>
    %220 = tpu.matmul %217, %218, %cst_98 {dimension_numbers = #tpu.dot_dimension_numbers<[1], [1], [0], [0], [0, 0, 1, 0], [], []>} : vector<16x8xf32>, vector<16x8xf32>, vector<16x16xf32> -> vector<16x16xf32>
    %cst_99 = arith.constant 0.353553385 : f32
    %221 = vector.broadcast %cst_99 : f32 to vector<16x16xf32>
    %222 = arith.mulf %220, %221 : vector<16x16xf32>
    %223 = arith.addf %222, %75 : vector<16x16xf32>
    %cst_100 = arith.constant dense<0xFF800000> : vector<16xf32>
    %224 = vector.multi_reduction <maximumf>, %223, %cst_100 [1] : vector<16x16xf32> to vector<16xf32>
    %225 = vector.shape_cast %224 : vector<16xf32> to vector<16x1xf32>
    %226 = vector.broadcast %225 : vector<16x1xf32> to vector<16x16xf32>
    %227 = arith.subf %223, %226 : vector<16x16xf32>
    %228 = math.exp %227 : vector<16x16xf32>
    %cst_101 = arith.constant dense<0.000000e+00> : vector<16xf32>
    %229 = vector.multi_reduction <add>, %228, %cst_101 [1] : vector<16x16xf32> to vector<16xf32>
    %230 = vector.shape_cast %229 : vector<16xf32> to vector<16x1xf32>
    %231 = vector.broadcast %230 : vector<16x1xf32> to vector<16x16xf32>
    %232 = arith.divf %228, %231 : vector<16x16xf32>
    %cst_102 = arith.constant dense<0.000000e+00> : vector<16x8xf32>
    %233 = tpu.matmul %232, %219, %cst_102 {dimension_numbers = #tpu.dot_dimension_numbers<[1], [0], [0], [1], [0, 0, 1, 1], [], []>} : vector<16x16xf32>, vector<16x8xf32>, vector<16x8xf32> -> vector<16x8xf32>
    %234 = tpu.concatenate %182, %199, %216, %233 in 1 : vector<16x8xf32>, vector<16x8xf32>, vector<16x8xf32>, vector<16x8xf32> -> vector<16x32xf32>
    %c1_103 = arith.constant 1 : index
    %c0_104 = arith.constant 0 : index
    %c0_105 = arith.constant 0 : index
    %235 = vector.load %arg5[%c1_103, %c0_104, %c0_105] : memref<2x32x32xf32, #tpu.memory_space<vmem>>, vector<1x32x32xf32>
    %236 = vector.shape_cast %235 : vector<1x32x32xf32> to vector<32x32xf32>
    %cst_106 = arith.constant dense<0.000000e+00> : vector<16x32xf32>
    %237 = tpu.matmul %234, %236, %cst_106 {dimension_numbers = #tpu.dot_dimension_numbers<[1], [0], [0], [1], [0, 0, 1, 1], [], []>} : vector<16x32xf32>, vector<32x32xf32>, vector<16x32xf32> -> vector<16x32xf32>
    %c1_107 = arith.constant 1 : index
    %c0_108 = arith.constant 0 : index
    %c0_109 = arith.constant 0 : index
    %238 = vector.load %arg6[%c1_107, %c0_108, %c0_109] : memref<2x1x32xf32, #tpu.memory_space<vmem>>, vector<1x1x32xf32>
    %239 = vector.shape_cast %238 : vector<1x1x32xf32> to vector<1x32xf32>
    %240 = vector.broadcast %239 : vector<1x32xf32> to vector<16x32xf32>
    %241 = arith.addf %237, %240 : vector<16x32xf32>
    %c0_110 = arith.constant 0 : index
    %c0_111 = arith.constant 0 : index
    %242 = vector.load %arg7[%c0_110, %c0_111] : memref<32x16xf32, #tpu.memory_space<vmem>>, vector<32x16xf32>
    %cst_112 = arith.constant dense<0.000000e+00> : vector<16x16xf32>
    %243 = tpu.matmul %241, %242, %cst_112 {dimension_numbers = #tpu.dot_dimension_numbers<[1], [0], [0], [1], [0, 0, 1, 1], [], []>} : vector<16x32xf32>, vector<32x16xf32>, vector<16x16xf32> -> vector<16x16xf32>
    %c0_113 = arith.constant 0 : index
    %c0_114 = arith.constant 0 : index
    %244 = vector.load %arg8[%c0_113, %c0_114] : memref<1x16xf32, #tpu.memory_space<vmem>>, vector<1x16xf32>
    %245 = vector.broadcast %244 : vector<1x16xf32> to vector<16x16xf32>
    %246 = arith.addf %243, %245 : vector<16x16xf32>
    %c0_115 = arith.constant 0 : index
    %c0_116 = arith.constant 0 : index
    %247 = vector.load %arg9[%c0_115, %c0_116] : memref<16x16xf32, #tpu.memory_space<vmem>>, vector<16x16xf32>
    tpu.vector_store %arg9[%c0_115, %c0_116], %246 {strides = array<i32>} : memref<16x16xf32, #tpu.memory_space<vmem>>, vector<16x16xf32>,
    return
  }
}

</mosaic_0001>

<llo_original>
// kernel: tpu_custom_call.1
$region0: #{tpu_custom_call.1}
  #allocation0 [shape = 'u32[]', space=smem, size = 0x4, offset = 0x4, fixed_abs, tag = 'smem constant byte address 0x4 - core index']
  #allocation1 [shape = 'u32[72,128]{1,0:T(1,128)}', space=vmem, size = 0x9000, scoped, tag = 'internal scratch']
  %s0 = inlined_call_operand.vmem [shape: f32[2,8], index: 0, kind: input, shape index: {}]
  %s1 = inlined_call_operand.hbm [shape: f32[8,8,32], index: 1, kind: input, shape index: {}]
  %s2 = inlined_call_operand.vmem [shape: f32[16,32], index: 2, kind: input, shape index: {}]
  %s3 = inlined_call_operand.hbm [shape: f32[2,32,96], index: 3, kind: input, shape index: {}]
  %s4 = inlined_call_operand.vmem [shape: f32[2,1,96], index: 4, kind: input, shape index: {}]
  %s5 = inlined_call_operand.hbm [shape: f32[2,32,32], index: 5, kind: input, shape index: {}]
  %s6 = inlined_call_operand.vmem [shape: f32[2,1,32], index: 6, kind: input, shape index: {}]
  %s7 = inlined_call_operand.vmem [shape: f32[32,16], index: 7, kind: input, shape index: {}]
  %s8 = inlined_call_operand.vmem [shape: f32[1,16], index: 8, kind: input, shape index: {}]
  %s9 = inlined_call_operand.hbm [shape: f32[16,16], index: 9, kind: output, shape index: {}]
  %s10 = sld [smem:[#allocation0]]
  $region58: #{tpu_custom_call.1} parent=0
    _
  %s12 = ssub.s32 1, %s10
  %s13 = scalar_select 0, %s12, %s10
  $region1: #{tpu_custom_call.1} parent=0
    #allocation2 [shape = 'u8[32768]{0}', space=vmem, size = 0x8000, scoped, tag = 'input window, operand 1, single buffered']
    #allocation3 [shape = 's32[1]{0}', space=sflag, size = 0x4, scoped, tag = 'scoped memory for tpu_custom_call.1']
    #allocation4 [shape = 's32[1]{0}', space=sflag, size = 0x4, scoped, tag = 'scoped memory for tpu_custom_call.1']
    #allocation5 [shape = 'u8[32768]{0}', space=vmem, size = 0x8000, scoped, tag = 'input window, operand 3, single buffered']
    #allocation6 [shape = 's32[1]{0}', space=sflag, size = 0x4, scoped, tag = 'scoped memory for tpu_custom_call.1']
    #allocation7 [shape = 'u8[32768]{0}', space=vmem, size = 0x8000, scoped, tag = 'input window, operand 5, single buffered']
    #allocation8 [shape = 'u8[8192]{0}', space=vmem, size = 0x2000, scoped, tag = 'output window, operand 0, single buffered']
    %14 = vsyncpa [#allocation3], 0
    %15 = vsyncpa [#allocation6], 0
    %16 = vsyncpa [#allocation4], 0
    // Predicated region
    $region2: #{tpu_custom_call.1} parent=1 // pred_check
      _
    $region3: #{tpu_custom_call.1} parent=1 // pred_check_branch
      %18 = sbr.rel (0) target = $region5
    $region4: #{tpu_custom_call.1} parent=1 // pred_region
      _
    $region5: #{tpu_custom_call.1} parent=1 // pred_fallthru
      _
    // Predicated region
    $region6: #{tpu_custom_call.1} parent=1 // pred_check
      _
    $region7: #{tpu_custom_call.1} parent=1 // pred_check_branch
      %20 = sbr.rel (0) target = $region9
    $region8: #{tpu_custom_call.1} parent=1 // pred_region
      %22 = vsyncadd [#allocation3], 0
      %s23 = sshll.u32 %s1, 4
      %s24 = int_to_ptr.hbm [resolvable:$true] %s23
      %s25 = sshll.u32 [#allocation2], 4
      %s26 = int_to_ptr.vmem [resolvable:$true] %s25
      %31 = dma.hbm_to_vmem [thread:$0]  %s24, 1024, %s26, [#allocation3], 128, 128, 8
    $region9: #{tpu_custom_call.1} parent=1 // pred_fallthru
      _
    // Predicated region
    $region10: #{tpu_custom_call.1} parent=1 // pred_check
      _
    $region11: #{tpu_custom_call.1} parent=1 // pred_check_branch
      %33 = sbr.rel (0) target = $region13
    $region12: #{tpu_custom_call.1} parent=1 // pred_region
      _
    $region13: #{tpu_custom_call.1} parent=1 // pred_fallthru
      _
    // Predicated region
    $region14: #{tpu_custom_call.1} parent=1 // pred_check
      _
    $region15: #{tpu_custom_call.1} parent=1 // pred_check_branch
      %35 = sbr.rel (0) target = $region17
    $region16: #{tpu_custom_call.1} parent=1 // pred_region
      %37 = vsyncadd [#allocation6], 0
      %s38 = sshll.u32 %s3, 4
      %s39 = int_to_ptr.hbm [resolvable:$true] %s38
      %s40 = sshll.u32 [#allocation5], 4
      %s41 = int_to_ptr.vmem [resolvable:$true] %s40
      %46 = dma.hbm_to_vmem [thread:$0]  %s39, 1024, %s41, [#allocation6], 128, 128, 8
    $region17: #{tpu_custom_call.1} parent=1 // pred_fallthru
      _
    // Predicated region
    $region18: #{tpu_custom_call.1} parent=1 // pred_check
      _
    $region19: #{tpu_custom_call.1} parent=1 // pred_check_branch
      %48 = sbr.rel (0) target = $region21
    $region20: #{tpu_custom_call.1} parent=1 // pred_region
      _
    $region21: #{tpu_custom_call.1} parent=1 // pred_fallthru
      _
    // Predicated region
    $region22: #{tpu_custom_call.1} parent=1 // pred_check
      _
    $region23: #{tpu_custom_call.1} parent=1 // pred_check_branch
      %50 = sbr.rel (0) target = $region25
    $region24: #{tpu_custom_call.1} parent=1 // pred_region
      %52 = vsyncadd [#allocation6], 0
      %s53 = sshll.u32 %s5, 4
      %s54 = int_to_ptr.hbm [resolvable:$true] %s53
      %s55 = sshll.u32 [#allocation7], 4
      %s56 = int_to_ptr.vmem [resolvable:$true] %s55
      %61 = dma.hbm_to_vmem [thread:$0]  %s54, 1024, %s56, [#allocation6], 128, 128, 8
    $region25: #{tpu_custom_call.1} parent=1 // pred_fallthru
      _
    // Predicated region
    $region26: #{tpu_custom_call.1} parent=1 // pred_check
      _
    $region27: #{tpu_custom_call.1} parent=1 // pred_check_branch
      %63 = sbr.rel (0) target = $region29
    $region28: #{tpu_custom_call.1} parent=1 // pred_region
      _
    $region29: #{tpu_custom_call.1} parent=1 // pred_fallthru
      _
    // Predicated region
    $region30: #{tpu_custom_call.1} parent=1 // pred_check
      _
    $region31: #{tpu_custom_call.1} parent=1 // pred_check_branch
      %65 = sbr.rel (0) target = $region33
    $region32: #{tpu_custom_call.1} parent=1 // pred_region
      _
    $region33: #{tpu_custom_call.1} parent=1 // pred_fallthru
      _
    // Predicated region
    $region34: #{tpu_custom_call.1} parent=1 // pred_check
      _
    $region35: #{tpu_custom_call.1} parent=1 // pred_check_branch
      %67 = sbr.rel (0) target = $region37
    $region36: #{tpu_custom_call.1} parent=1 // pred_region
      _
    $region37: #{tpu_custom_call.1} parent=1 // pred_fallthru
      _
    // Predicated region
    $region38: #{tpu_custom_call.1} parent=1 // pred_check
      _
    $region39: #{tpu_custom_call.1} parent=1 // pred_check_branch
      %69 = sbr.rel (0) target = $region41
    $region40: #{tpu_custom_call.1} parent=1 // pred_region
      %71 = dma.done [#allocation3], 1024
    $region41: #{tpu_custom_call.1} parent=1 // pred_fallthru
      _
    // Predicated region
    $region42: #{tpu_custom_call.1} parent=1 // pred_check
      _
    $region43: #{tpu_custom_call.1} parent=1 // pred_check_branch
      %73 = sbr.rel (0) target = $region45
    $region44: #{tpu_custom_call.1} parent=1 // pred_region
      %75 = dma.done [#allocation6], 1024
    $region45: #{tpu_custom_call.1} parent=1 // pred_fallthru
      _
    // Predicated region
    $region46: #{tpu_custom_call.1} parent=1 // pred_check
      _
    $region47: #{tpu_custom_call.1} parent=1 // pred_check_branch
      %77 = sbr.rel (0) target = $region49
    $region48: #{tpu_custom_call.1} parent=1 // pred_region
      %79 = dma.done [#allocation6], 1024
    $region49: #{tpu_custom_call.1} parent=1 // pred_fallthru
      _
    %v80 = vld [vmem:[%s0] sm:$0x3]
    %v81 = vld [vmem:[#allocation2] sm:$0xff]
    %vm82 = vcmask 64512
    %v84 = vsel %vm82, %v80, 0
    %86 = vmatpush.msra.mxu0 0.0
    %87 = vmatpush.msra.mxu0 0.0
    %88 = vmatpush.msra.mxu0 0.0
    %89 = vmatpush.msra.mxu0 0.0
    %90 = vmatpush.msra.mxu0 0.0
    %91 = vmatpush.msra.mxu0 0.0
    %92 = vmatpush.msra.mxu0 0.0
    %93 = vmatpush.msra.mxu0 0.0
    %94 = vmatpush.msra.mxu0 0.0
    %95 = vmatpush.msra.mxu0 0.0
    %96 = vmatpush.msra.mxu0 0.0
    %97 = vmatpush.msra.mxu0 0.0
    %98 = vmatpush.msra.mxu0 0.0
    %99 = vmatpush.msra.mxu0 0.0
    %100 = vmatpush.msra.mxu0 0.0
    %101 = vmatpush.msra.mxu0 %v81
    %102 = vmatmul.f32.gmra.mxu0 %v84
    %v103 = vpop.f32.mrf.mxu0
    %v104 = vadd.f32 0.0, %v103
    %105 = vdwg.mxu0
    %s106 = scalar_lea.vmem [#allocation2], 8
    %v107 = vld [vmem:[%s106] sm:$0xff]
    %108 = vmatpush.msra.mxu0 0.0
    %109 = vmatpush.msra.mxu0 0.0
    %110 = vmatpush.msra.mxu0 0.0
    %111 = vmatpush.msra.mxu0 0.0
    %112 = vmatpush.msra.mxu0 0.0
    %113 = vmatpush.msra.mxu0 0.0
    %114 = vmatpush.msra.mxu0 0.0
    %115 = vmatpush.msra.mxu0 0.0
    %116 = vmatpush.msra.mxu0 0.0
    %117 = vmatpush.msra.mxu0 0.0
    %118 = vmatpush.msra.mxu0 0.0
    %119 = vmatpush.msra.mxu0 0.0
    %120 = vmatpush.msra.mxu0 0.0
    %121 = vmatpush.msra.mxu0 0.0
    %122 = vmatpush.msra.mxu0 0.0
    %123 = vmatpush.msra.mxu0 %v107
    %124 = vmatmul.f32.gmra.mxu0 %v84
    %v125 = vpop.f32.mrf.mxu0
    %v126 = vadd.f32 0.0, %v125
    %127 = vdwg.mxu0
    %s128 = scalar_lea.vmem [#allocation2], 16
    %v129 = vld [vmem:[%s128] sm:$0xff]
    %130 = vmatpush.msra.mxu0 0.0
    %131 = vmatpush.msra.mxu0 0.0
    %132 = vmatpush.msra.mxu0 0.0
    %133 = vmatpush.msra.mxu0 0.0
    %134 = vmatpush.msra.mxu0 0.0
    %135 = vmatpush.msra.mxu0 0.0
    %136 = vmatpush.msra.mxu0 0.0
    %137 = vmatpush.msra.mxu0 0.0
    %138 = vmatpush.msra.mxu0 0.0
    %139 = vmatpush.msra.mxu0 0.0
    %140 = vmatpush.msra.mxu0 0.0
    %141 = vmatpush.msra.mxu0 0.0
    %142 = vmatpush.msra.mxu0 0.0
    %143 = vmatpush.msra.mxu0 0.0
    %144 = vmatpush.msra.mxu0 0.0
    %145 = vmatpush.msra.mxu0 %v129
    %146 = vmatmul.f32.gmra.mxu0 %v84
    %v147 = vpop.f32.mrf.mxu0
    %v148 = vadd.f32 0.0, %v147
    %149 = vdwg.mxu0
    %s150 = scalar_lea.vmem [#allocation2], 24
    %v151 = vld [vmem:[%s150] sm:$0xff]
    %152 = vmatpush.msra.mxu0 0.0
    %153 = vmatpush.msra.mxu0 0.0
    %154 = vmatpush.msra.mxu0 0.0
    %155 = vmatpush.msra.mxu0 0.0
    %156 = vmatpush.msra.mxu0 0.0
    %157 = vmatpush.msra.mxu0 0.0
    %158 = vmatpush.msra.mxu0 0.0
    %159 = vmatpush.msra.mxu0 0.0
    %160 = vmatpush.msra.mxu0 0.0
    %161 = vmatpush.msra.mxu0 0.0
    %162 = vmatpush.msra.mxu0 0.0
    %163 = vmatpush.msra.mxu0 0.0
    %164 = vmatpush.msra.mxu0 0.0
    %165 = vmatpush.msra.mxu0 0.0
    %166 = vmatpush.msra.mxu0 0.0
    %167 = vmatpush.msra.mxu0 %v151
    %168 = vmatmul.f32.gmra.mxu0 %v84
    %v169 = vpop.f32.mrf.mxu0
    %v170 = vadd.f32 0.0, %v169
    %171 = vdwg.mxu0
    %s172 = scalar_lea.vmem [#allocation2], 32
    %v173 = vld [vmem:[%s172] sm:$0xff]
    %174 = vmatpush.msra.mxu0 0.0
    %175 = vmatpush.msra.mxu0 0.0
    %176 = vmatpush.msra.mxu0 0.0
    %177 = vmatpush.msra.mxu0 0.0
    %178 = vmatpush.msra.mxu0 0.0
    %179 = vmatpush.msra.mxu0 0.0
    %180 = vmatpush.msra.mxu0 0.0
    %181 = vmatpush.msra.mxu0 0.0
    %182 = vmatpush.msra.mxu0 0.0
    %183 = vmatpush.msra.mxu0 0.0
    %184 = vmatpush.msra.mxu0 0.0
    %185 = vmatpush.msra.mxu0 0.0
    %186 = vmatpush.msra.mxu0 0.0
    %187 = vmatpush.msra.mxu0 0.0
    %188 = vmatpush.msra.mxu0 0.0
    %189 = vmatpush.msra.mxu0 %v173
    %190 = vmatmul.f32.gmra.mxu0 %v84
    %v191 = vpop.f32.mrf.mxu0
    %v192 = vadd.f32 0.0, %v191
    %193 = vdwg.mxu0
    %s194 = scalar_lea.vmem [#allocation2], 40
    %v195 = vld [vmem:[%s194] sm:$0xff]
    %196 = vmatpush.msra.mxu0 0.0
    %197 = vmatpush.msra.mxu0 0.0
    %198 = vmatpush.msra.mxu0 0.0
    %199 = vmatpush.msra.mxu0 0.0
    %200 = vmatpush.msra.mxu0 0.0
    %201 = vmatpush.msra.mxu0 0.0
    %202 = vmatpush.msra.mxu0 0.0
    %203 = vmatpush.msra.mxu0 0.0
    %204 = vmatpush.msra.mxu0 0.0
    %205 = vmatpush.msra.mxu0 0.0
    %206 = vmatpush.msra.mxu0 0.0
    %207 = vmatpush.msra.mxu0 0.0
    %208 = vmatpush.msra.mxu0 0.0
    %209 = vmatpush.msra.mxu0 0.0
    %210 = vmatpush.msra.mxu0 0.0
    %211 = vmatpush.msra.mxu0 %v195
    %212 = vmatmul.f32.gmra.mxu0 %v84
    %v213 = vpop.f32.mrf.mxu0
    %v214 = vadd.f32 0.0, %v213
    %215 = vdwg.mxu0
    %s216 = scalar_lea.vmem [#allocation2], 48
    %v217 = vld [vmem:[%s216] sm:$0xff]
    %218 = vmatpush.msra.mxu0 0.0
    %219 = vmatpush.msra.mxu0 0.0
    %220 = vmatpush.msra.mxu0 0.0
    %221 = vmatpush.msra.mxu0 0.0
    %222 = vmatpush.msra.mxu0 0.0
    %223 = vmatpush.msra.mxu0 0.0
    %224 = vmatpush.msra.mxu0 0.0
    %225 = vmatpush.msra.mxu0 0.0
    %226 = vmatpush.msra.mxu0 0.0
    %227 = vmatpush.msra.mxu0 0.0
    %228 = vmatpush.msra.mxu0 0.0
    %229 = vmatpush.msra.mxu0 0.0
    %230 = vmatpush.msra.mxu0 0.0
    %231 = vmatpush.msra.mxu0 0.0
    %232 = vmatpush.msra.mxu0 0.0
    %233 = vmatpush.msra.mxu0 %v217
    %234 = vmatmul.f32.gmra.mxu0 %v84
    %v235 = vpop.f32.mrf.mxu0
    %v236 = vadd.f32 0.0, %v235
    %237 = vdwg.mxu0
    %s238 = scalar_lea.vmem [#allocation2], 56
    %v239 = vld [vmem:[%s238] sm:$0xff]
    %240 = vmatpush.msra.mxu0 0.0
    %241 = vmatpush.msra.mxu0 0.0
    %242 = vmatpush.msra.mxu0 0.0
    %243 = vmatpush.msra.mxu0 0.0
    %244 = vmatpush.msra.mxu0 0.0
    %245 = vmatpush.msra.mxu0 0.0
    %246 = vmatpush.msra.mxu0 0.0
    %247 = vmatpush.msra.mxu0 0.0
    %248 = vmatpush.msra.mxu0 0.0
    %249 = vmatpush.msra.mxu0 0.0
    %250 = vmatpush.msra.mxu0 0.0
    %251 = vmatpush.msra.mxu0 0.0
    %252 = vmatpush.msra.mxu0 0.0
    %253 = vmatpush.msra.mxu0 0.0
    %254 = vmatpush.msra.mxu0 0.0
    %255 = vmatpush.msra.mxu0 %v239
    %256 = vmatmul.f32.gmra.mxu0 %v84
    %v257 = vpop.f32.mrf.mxu0
    %v258 = vadd.f32 0.0, %v257
    %259 = vdwg.mxu0
    %v261 = vrot.slane %v126, 6
    %v264 = vrot.slane %v148, 4
    %v267 = vrot.slane %v170, 2
    %v270 = vrot.slane %v214, 6
    %v273 = vrot.slane %v236, 4
    %v276 = vrot.slane %v258, 2
    %vm278 = vcmask 1041408
    %v279 = vsel %vm278, %v104, %v261
    %vm280 = vcmask 1043456
    %v281 = vsel %vm280, %v279, %v264
    %vm282 = vcmask 1045504
    %v283 = vsel %vm282, %v281, %v267
    %v284 = vsel %vm278, %v192, %v270
    %v285 = vsel %vm280, %v284, %v273
    %v286 = vsel %vm282, %v285, %v276
    %v287 = vld [vmem:[%s2] sm:$0xff]
    %v288 = vld [vmem:[%s2 + $0x8] sm:$0xff]
    %v289 = vadd.f32 %v283, %v287
    %v290 = vadd.f32 %v286, %v288
    %vm291 = vcmp.gt.f32.partialorder %v289, 0.0
    %vm292 = vcmp.gt.f32.partialorder %v290, 0.0
    %v293 = vmul.f32 %v289, 1.442695
    %v294 = vpow.pop %v293
    %v295 = vmul.f32 %v290, 1.442695
    %v296 = vpow.pop %v295
    %v297 = vsub.f32 %v294, 1.0
    %v298 = vsub.f32 %v296, 1.0
    %v299 = vmul.f32 %v297, 1.6732632
    %v300 = vmul.f32 %v298, 1.6732632
    %v301 = vsel %vm291, %v289, %v299
    %v302 = vsel %vm292, %v290, %v300
    %v303 = vmul.f32 %v301, 1.050701
    %v304 = vmul.f32 %v302, 1.050701
    %v305 = vlaneseq
    %v306 = vshrl.u32 %v305, 7
    %v307 = vadd.s32 %v306, 8
    %v308 = vlaneseq
    %v309 = vand.u32 %v308, 127
    %vm310 = vcmp.lt.s32.totalorder %v306, 0
    %v311 = vsub.s32 0, %v306
    %v312 = vsel %vm310, %v311, %v306
    %v313 = vshrl.u32 %v312, 1
    %v314 = vand.u32 %v312, 1
    %v315 = vsub.s32 0, %v314
    %v316 = vsel %vm310, %v315, %v314
    %vm317 = vcmp.lt.s32.totalorder %v307, 0
    %v318 = vsub.s32 0, %v307
    %v319 = vsel %vm317, %v318, %v307
    %v320 = vshrl.u32 %v319, 1
    %v321 = vand.u32 %v319, 1
    %v322 = vsub.s32 0, %v321
    %v323 = vsel %vm317, %v322, %v321
    %vm324 = vcmp.ne.s32.totalorder %v316, 0
    %vm325 = vcmp.ne.s32.totalorder %v323, 0
    %vm326 = vcmp.lt.s32.totalorder %v316, 0
    %vm327 = vcmp.lt.s32.totalorder %v323, 0
    %vm328 = vmand %vm326, %vm324
    %vm329 = vmand %vm327, %vm325
    %v330 = vadd.s32 %v316, 2
    %v331 = vadd.s32 %v323, 2
    %v332 = vsel %vm328, %v330, %v316
    %v333 = vsel %vm329, %v331, %v323
    %vm334 = vcmp.lt.s32.totalorder %v309, 0
    %v335 = vsub.s32 0, %v309
    %v336 = vsel %vm334, %v335, %v309
    %v337 = vshrl.u32 %v336, 1
    %v338 = vand.u32 %v336, 1
    %v339 = vsub.s32 0, %v338
    %v340 = vsel %vm334, %v339, %v338
    %vm341 = vcmp.ne.s32.totalorder %v340, 0
    %vm342 = vcmp.lt.s32.totalorder %v340, 0
    %vm343 = vmand %vm342, %vm341
    %v344 = vadd.s32 %v340, 2
    %v345 = vsel %vm343, %v344, %v340
    %vm346 = vcmp.eq.s32.totalorder %v332, %v345
    %vm347 = vcmp.eq.s32.totalorder %v333, %v345
    %v348 = vsel %vm346, 0.0, -1e+30
    %v349 = vsel %vm347, 0.0, -1e+30
    %v350 = vld [vmem:[#allocation5] sm:$0xff]
    %v351 = vld [vmem:[#allocation5 + $0x8] sm:$0xff]
    %v352 = vld [vmem:[#allocation5 + $0x10] sm:$0xff]
    %v353 = vld [vmem:[#allocation5 + $0x18] sm:$0xff]
    %v354 = vld [vmem:[%s4] sm:$0x1]
    %v356 = vperm.slane %v354, 0
    %vm358 = vcmask 261120
    %v360 = vsel %vm358, %v303, 0
    %v363 = vsel %vm358, %v304, 0
    %365 = vmatpush.msra.mxu0 0.0
    %366 = vmatpush.msra.mxu0 0.0
    %367 = vmatpush.msra.mxu0 0.0
    %368 = vmatpush.msra.mxu0 0.0
    %369 = vmatpush.msra.mxu0 0.0
    %370 = vmatpush.msra.mxu0 0.0
    %371 = vmatpush.msra.mxu0 0.0
    %372 = vmatpush.msra.mxu0 0.0
    %373 = vmatpush.msra.mxu0 0.0
    %374 = vmatpush.msra.mxu0 0.0
    %375 = vmatpush.msra.mxu0 0.0
    %376 = vmatpush.msra.mxu0 0.0
    %377 = vmatpush.msra.mxu0 %v353
    %378 = vmatpush.msra.mxu0 %v352
    %379 = vmatpush.msra.mxu0 %v351
    %380 = vmatpush.msra.mxu0 %v350
    %381 = vmatmul.f32.gmra.mxu0 %v360
    %v382 = vpop.f32.mrf.mxu0
    %v383 = vadd.f32 %v356, %v382
    %384 = vmatmul.f32.gmra.mxu0 %v363
    %v385 = vpop.f32.mrf.mxu0
    %v386 = vadd.f32 %v356, %v385
    %387 = vdwg.mxu0
    %390 = vrot.lane.b32.xlu0 %v383, 96
    %v391 = vpop.permute.xlu0 %390
    %392 = vrot.lane.b32.xlu0 %v386, 96
    %v393 = vpop.permute.xlu0 %392
    %v394 = vsel %vm82, %v383, 0
    %v396 = vsel %vm82, %v386, 0
    %v398 = vsel %vm82, %v391, 0
    %v400 = vsel %vm82, %v393, 0
    %402 = vmatpush.xpose.msra.mxu0 0.0
    %403 = vmatpush.xpose.msra.mxu0 0.0
    %404 = vmatpush.xpose.msra.mxu0 0.0
    %405 = vmatpush.xpose.msra.mxu0 0.0
    %406 = vmatpush.xpose.msra.mxu0 0.0
    %407 = vmatpush.xpose.msra.mxu0 0.0
    %408 = vmatpush.xpose.msra.mxu0 0.0
    %409 = vmatpush.xpose.msra.mxu0 0.0
    %410 = vmatpush.xpose.msra.mxu0 0.0
    %411 = vmatpush.xpose.msra.mxu0 0.0
    %412 = vmatpush.xpose.msra.mxu0 0.0
    %413 = vmatpush.xpose.msra.mxu0 0.0
    %414 = vmatpush.xpose.msra.mxu0 0.0
    %415 = vmatpush.xpose.msra.mxu0 0.0
    %416 = vmatpush.xpose.msra.mxu0 %v400
    %417 = vmatpush.xpose.msra.mxu0 %v398
    %418 = vmatmul.f32.gmra.mxu0 %v394
    %v419 = vpop.f32.mrf.mxu0
    %v420 = vadd.f32 0.0, %v419
    %421 = vmatmul.f32.gmra.mxu0 %v396
    %v422 = vpop.f32.mrf.mxu0
    %v423 = vadd.f32 0.0, %v422
    %424 = vdwg.mxu0
    %v425 = vmul.f32 %v420, 0.35355338
    %v426 = vmul.f32 %v423, 0.35355338
    %v427 = vadd.f32 %v425, %v348
    %v428 = vadd.f32 %v426, %v349
    %vm429 = vcmask 130048
    %v430 = vsel %vm429, %v427, -inf
    %431 = vmax.xlane.f32.xlu0 %v430
    %v432 = vpop.xlane.xlu0 %431
    %v433 = vsel %vm429, %v428, -inf
    %434 = vmax.xlane.f32.xlu0 %v433
    %v435 = vpop.xlane.xlu0 %434
    %v436 = vsub.f32 %v427, %v432
    %v437 = vsub.f32 %v428, %v435
    %v438 = vmul.f32 %v436, 1.442695
    %v439 = vpow.pop %v438
    %v440 = vmul.f32 %v437, 1.442695
    %v441 = vpow.pop %v440
    %v442 = vsel %vm429, %v439, 0.0
    %443 = vadd.xlane.f32.xlu0 %v442
    %v444 = vpop.xlane.xlu0 %443
    %v445 = vsel %vm429, %v441, 0.0
    %446 = vadd.xlane.f32.xlu0 %v445
    %v447 = vpop.xlane.xlu0 %446
    %v448 = vrcp.pop %v444
    %v449 = vmul.f32 %v444, %v448
    %v450 = vsub.f32 1.0, %v449
    %v451 = vmul.f32 %v448, %v450
    %v452 = vadd.f32 %v448, %v451
    %vm453 = vweird.f32 %v444
    %vm454 = vweird.f32 %v448
    %vm455 = vmor %vm453, %vm454
    %v456 = vsel %vm455, %v448, %v452
    %v457 = vand.u32 2147483647, %v444
    %vm458 = vcmp.eq.f32.partialorder %v457, 8.507059e+37
    %v459 = vand.u32 %v444, 2147483648
    %v460 = vor.u32 1.1754944e-38, %v459
    %v461 = vsel %vm458, %v460, %v456
    %v462 = vmul.f32 %v439, %v461
    %v463 = vrcp.pop %v447
    %v464 = vmul.f32 %v447, %v463
    %v465 = vsub.f32 1.0, %v464
    %v466 = vmul.f32 %v463, %v465
    %v467 = vadd.f32 %v463, %v466
    %vm468 = vweird.f32 %v447
    %vm469 = vweird.f32 %v463
    %vm470 = vmor %vm468, %vm469
    %v471 = vsel %vm470, %v463, %v467
    %v472 = vand.u32 2147483647, %v447
    %vm473 = vcmp.eq.f32.partialorder %v472, 8.507059e+37
    %v474 = vand.u32 %v447, 2147483648
    %v475 = vor.u32 1.1754944e-38, %v474
    %v476 = vsel %vm473, %v475, %v471
    %v477 = vmul.f32 %v441, %v476
    %478 = vrot.lane.b32.xlu0 %v383, 64
    %v479 = vpop.permute.xlu0 %478
    %480 = vrot.lane.b32.xlu0 %v386, 64
    %v481 = vpop.permute.xlu0 %480
    %v485 = vsel %vm429, %v462, 0
    %v488 = vsel %vm429, %v477, 0
    %490 = vmatpush.msra.mxu0 0.0
    %491 = vmatpush.msra.mxu0 0.0
    %492 = vmatpush.msra.mxu0 0.0
    %493 = vmatpush.msra.mxu0 0.0
    %494 = vmatpush.msra.mxu0 0.0
    %495 = vmatpush.msra.mxu0 0.0
    %496 = vmatpush.msra.mxu0 0.0
    %497 = vmatpush.msra.mxu0 0.0
    %498 = vmatpush.msra.mxu0 0.0
    %499 = vmatpush.msra.mxu0 0.0
    %500 = vmatpush.msra.mxu0 0.0
    %501 = vmatpush.msra.mxu0 0.0
    %502 = vmatpush.msra.mxu0 0.0
    %503 = vmatpush.msra.mxu0 0.0
    %504 = vmatpush.msra.mxu0 %v481
    %505 = vmatpush.msra.mxu0 %v479
    %506 = vmatmul.f32.gmra.mxu0 %v485
    %v507 = vpop.f32.mrf.mxu0
    %v508 = vadd.f32 0.0, %v507
    %509 = vmatmul.f32.gmra.mxu0 %v488
    %v510 = vpop.f32.mrf.mxu0
    %v511 = vadd.f32 0.0, %v510
    %512 = vdwg.mxu0
    %513 = vrot.lane.b32.xlu0 %v383, 120
    %v514 = vpop.permute.xlu0 %513
    %515 = vrot.lane.b32.xlu0 %v386, 120
    %v516 = vpop.permute.xlu0 %515
    %517 = vrot.lane.b32.xlu0 %v383, 88
    %v518 = vpop.permute.xlu0 %517
    %519 = vrot.lane.b32.xlu0 %v386, 88
    %v520 = vpop.permute.xlu0 %519
    %v521 = vsel %vm82, %v514, 0
    %v523 = vsel %vm82, %v516, 0
    %v525 = vsel %vm82, %v518, 0
    %v527 = vsel %vm82, %v520, 0
    %529 = vmatpush.xpose.msra.mxu0 0.0
    %530 = vmatpush.xpose.msra.mxu0 0.0
    %531 = vmatpush.xpose.msra.mxu0 0.0
    %532 = vmatpush.xpose.msra.mxu0 0.0
    %533 = vmatpush.xpose.msra.mxu0 0.0
    %534 = vmatpush.xpose.msra.mxu0 0.0
    %535 = vmatpush.xpose.msra.mxu0 0.0
    %536 = vmatpush.xpose.msra.mxu0 0.0
    %537 = vmatpush.xpose.msra.mxu0 0.0
    %538 = vmatpush.xpose.msra.mxu0 0.0
    %539 = vmatpush.xpose.msra.mxu0 0.0
    %540 = vmatpush.xpose.msra.mxu0 0.0
    %541 = vmatpush.xpose.msra.mxu0 0.0
    %542 = vmatpush.xpose.msra.mxu0 0.0
    %543 = vmatpush.xpose.msra.mxu0 %v527
    %544 = vmatpush.xpose.msra.mxu0 %v525
    %545 = vmatmul.f32.gmra.mxu0 %v521
    %v546 = vpop.f32.mrf.mxu0
    %v547 = vadd.f32 0.0, %v546
    %548 = vmatmul.f32.gmra.mxu0 %v523
    %v549 = vpop.f32.mrf.mxu0
    %v550 = vadd.f32 0.0, %v549
    %551 = vdwg.mxu0
    %v552 = vmul.f32 %v547, 0.35355338
    %v553 = vmul.f32 %v550, 0.35355338
    %v554 = vadd.f32 %v552, %v348
    %v555 = vadd.f32 %v553, %v349
    %v556 = vsel %vm429, %v554, -inf
    %557 = vmax.xlane.f32.xlu0 %v556
    %v558 = vpop.xlane.xlu0 %557
    %v559 = vsel %vm429, %v555, -inf
    %560 = vmax.xlane.f32.xlu0 %v559
    %v561 = vpop.xlane.xlu0 %560
    %v562 = vsub.f32 %v554, %v558
    %v563 = vsub.f32 %v555, %v561
    %v564 = vmul.f32 %v562, 1.442695
    %v565 = vpow.pop %v564
    %v566 = vmul.f32 %v563, 1.442695
    %v567 = vpow.pop %v566
    %v568 = vsel %vm429, %v565, 0.0
    %569 = vadd.xlane.f32.xlu0 %v568
    %v570 = vpop.xlane.xlu0 %569
    %v571 = vsel %vm429, %v567, 0.0
    %572 = vadd.xlane.f32.xlu0 %v571
    %v573 = vpop.xlane.xlu0 %572
    %v574 = vrcp.pop %v570
    %v575 = vmul.f32 %v570, %v574
    %v576 = vsub.f32 1.0, %v575
    %v577 = vmul.f32 %v574, %v576
    %v578 = vadd.f32 %v574, %v577
    %vm579 = vweird.f32 %v570
    %vm580 = vweird.f32 %v574
    %vm581 = vmor %vm579, %vm580
    %v582 = vsel %vm581, %v574, %v578
    %v583 = vand.u32 2147483647, %v570
    %vm584 = vcmp.eq.f32.partialorder %v583, 8.507059e+37
    %v585 = vand.u32 %v570, 2147483648
    %v586 = vor.u32 1.1754944e-38, %v585
    %v587 = vsel %vm584, %v586, %v582
    %v588 = vmul.f32 %v565, %v587
    %v589 = vrcp.pop %v573
    %v590 = vmul.f32 %v573, %v589
    %v591 = vsub.f32 1.0, %v590
    %v592 = vmul.f32 %v589, %v591
    %v593 = vadd.f32 %v589, %v592
    %vm594 = vweird.f32 %v573
    %vm595 = vweird.f32 %v589
    %vm596 = vmor %vm594, %vm595
    %v597 = vsel %vm596, %v589, %v593
    %v598 = vand.u32 2147483647, %v573
    %vm599 = vcmp.eq.f32.partialorder %v598, 8.507059e+37
    %v600 = vand.u32 %v573, 2147483648
    %v601 = vor.u32 1.1754944e-38, %v600
    %v602 = vsel %vm599, %v601, %v597
    %v603 = vmul.f32 %v567, %v602
    %604 = vrot.lane.b32.xlu0 %v383, 56
    %v605 = vpop.permute.xlu0 %604
    %606 = vrot.lane.b32.xlu0 %v386, 56
    %v607 = vpop.permute.xlu0 %606
    %v611 = vsel %vm429, %v588, 0
    %v614 = vsel %vm429, %v603, 0
    %616 = vmatpush.msra.mxu0 0.0
    %617 = vmatpush.msra.mxu0 0.0
    %618 = vmatpush.msra.mxu0 0.0
    %619 = vmatpush.msra.mxu0 0.0
    %620 = vmatpush.msra.mxu0 0.0
    %621 = vmatpush.msra.mxu0 0.0
    %622 = vmatpush.msra.mxu0 0.0
    %623 = vmatpush.msra.mxu0 0.0
    %624 = vmatpush.msra.mxu0 0.0
    %625 = vmatpush.msra.mxu0 0.0
    %626 = vmatpush.msra.mxu0 0.0
    %627 = vmatpush.msra.mxu0 0.0
    %628 = vmatpush.msra.mxu0 0.0
    %629 = vmatpush.msra.mxu0 0.0
    %630 = vmatpush.msra.mxu0 %v607
    %631 = vmatpush.msra.mxu0 %v605
    %632 = vmatmul.f32.gmra.mxu0 %v611
    %v633 = vpop.f32.mrf.mxu0
    %v634 = vadd.f32 0.0, %v633
    %635 = vmatmul.f32.gmra.mxu0 %v614
    %v636 = vpop.f32.mrf.mxu0
    %v637 = vadd.f32 0.0, %v636
    %638 = vdwg.mxu0
    %639 = vrot.lane.b32.xlu0 %v383, 112
    %v640 = vpop.permute.xlu0 %639
    %641 = vrot.lane.b32.xlu0 %v386, 112
    %v642 = vpop.permute.xlu0 %641
    %643 = vrot.lane.b32.xlu0 %v383, 80
    %v644 = vpop.permute.xlu0 %643
    %645 = vrot.lane.b32.xlu0 %v386, 80
    %v646 = vpop.permute.xlu0 %645
    %v647 = vsel %vm82, %v640, 0
    %v649 = vsel %vm82, %v642, 0
    %v651 = vsel %vm82, %v644, 0
    %v653 = vsel %vm82, %v646, 0
    %655 = vmatpush.xpose.msra.mxu0 0.0
    %656 = vmatpush.xpose.msra.mxu0 0.0
    %657 = vmatpush.xpose.msra.mxu0 0.0
    %658 = vmatpush.xpose.msra.mxu0 0.0
    %659 = vmatpush.xpose.msra.mxu0 0.0
    %660 = vmatpush.xpose.msra.mxu0 0.0
    %661 = vmatpush.xpose.msra.mxu0 0.0
    %662 = vmatpush.xpose.msra.mxu0 0.0
    %663 = vmatpush.xpose.msra.mxu0 0.0
    %664 = vmatpush.xpose.msra.mxu0 0.0
    %665 = vmatpush.xpose.msra.mxu0 0.0
    %666 = vmatpush.xpose.msra.mxu0 0.0
    %667 = vmatpush.xpose.msra.mxu0 0.0
    %668 = vmatpush.xpose.msra.mxu0 0.0
    %669 = vmatpush.xpose.msra.mxu0 %v653
    %670 = vmatpush.xpose.msra.mxu0 %v651
    %671 = vmatmul.f32.gmra.mxu0 %v647
    %v672 = vpop.f32.mrf.mxu0
    %v673 = vadd.f32 0.0, %v672
    %674 = vmatmul.f32.gmra.mxu0 %v649
    %v675 = vpop.f32.mrf.mxu0
    %v676 = vadd.f32 0.0, %v675
    %677 = vdwg.mxu0
    %v678 = vmul.f32 %v673, 0.35355338
    %v679 = vmul.f32 %v676, 0.35355338
    %v680 = vadd.f32 %v678, %v348
    %v681 = vadd.f32 %v679, %v349
    %v682 = vsel %vm429, %v680, -inf
    %683 = vmax.xlane.f32.xlu0 %v682
    %v684 = vpop.xlane.xlu0 %683
    %v685 = vsel %vm429, %v681, -inf
    %686 = vmax.xlane.f32.xlu0 %v685
    %v687 = vpop.xlane.xlu0 %686
    %v688 = vsub.f32 %v680, %v684
    %v689 = vsub.f32 %v681, %v687
    %v690 = vmul.f32 %v688, 1.442695
    %v691 = vpow.pop %v690
    %v692 = vmul.f32 %v689, 1.442695
    %v693 = vpow.pop %v692
    %v694 = vsel %vm429, %v691, 0.0
    %695 = vadd.xlane.f32.xlu0 %v694
    %v696 = vpop.xlane.xlu0 %695
    %v697 = vsel %vm429, %v693, 0.0
    %698 = vadd.xlane.f32.xlu0 %v697
    %v699 = vpop.xlane.xlu0 %698
    %v700 = vrcp.pop %v696
    %v701 = vmul.f32 %v696, %v700
    %v702 = vsub.f32 1.0, %v701
    %v703 = vmul.f32 %v700, %v702
    %v704 = vadd.f32 %v700, %v703
    %vm705 = vweird.f32 %v696
    %vm706 = vweird.f32 %v700
    %vm707 = vmor %vm705, %vm706
    %v708 = vsel %vm707, %v700, %v704
    %v709 = vand.u32 2147483647, %v696
    %vm710 = vcmp.eq.f32.partialorder %v709, 8.507059e+37
    %v711 = vand.u32 %v696, 2147483648
    %v712 = vor.u32 1.1754944e-38, %v711
    %v713 = vsel %vm710, %v712, %v708
    %v714 = vmul.f32 %v691, %v713
    %v715 = vrcp.pop %v699
    %v716 = vmul.f32 %v699, %v715
    %v717 = vsub.f32 1.0, %v716
    %v718 = vmul.f32 %v715, %v717
    %v719 = vadd.f32 %v715, %v718
    %vm720 = vweird.f32 %v699
    %vm721 = vweird.f32 %v715
    %vm722 = vmor %vm720, %vm721
    %v723 = vsel %vm722, %v715, %v719
    %v724 = vand.u32 2147483647, %v699
    %vm725 = vcmp.eq.f32.partialorder %v724, 8.507059e+37
    %v726 = vand.u32 %v699, 2147483648
    %v727 = vor.u32 1.1754944e-38, %v726
    %v728 = vsel %vm725, %v727, %v723
    %v729 = vmul.f32 %v693, %v728
    %730 = vrot.lane.b32.xlu0 %v383, 48
    %v731 = vpop.permute.xlu0 %730
    %732 = vrot.lane.b32.xlu0 %v386, 48
    %v733 = vpop.permute.xlu0 %732
    %v737 = vsel %vm429, %v714, 0
    %v740 = vsel %vm429, %v729, 0
    %742 = vmatpush.msra.mxu0 0.0
    %743 = vmatpush.msra.mxu0 0.0
    %744 = vmatpush.msra.mxu0 0.0
    %745 = vmatpush.msra.mxu0 0.0
    %746 = vmatpush.msra.mxu0 0.0
    %747 = vmatpush.msra.mxu0 0.0
    %748 = vmatpush.msra.mxu0 0.0
    %749 = vmatpush.msra.mxu0 0.0
    %750 = vmatpush.msra.mxu0 0.0
    %751 = vmatpush.msra.mxu0 0.0
    %752 = vmatpush.msra.mxu0 0.0
    %753 = vmatpush.msra.mxu0 0.0
    %754 = vmatpush.msra.mxu0 0.0
    %755 = vmatpush.msra.mxu0 0.0
    %756 = vmatpush.msra.mxu0 %v733
    %757 = vmatpush.msra.mxu0 %v731
    %758 = vmatmul.f32.gmra.mxu0 %v737
    %v759 = vpop.f32.mrf.mxu0
    %v760 = vadd.f32 0.0, %v759
    %761 = vmatmul.f32.gmra.mxu0 %v740
    %v762 = vpop.f32.mrf.mxu0
    %v763 = vadd.f32 0.0, %v762
    %764 = vdwg.mxu0
    %765 = vrot.lane.b32.xlu0 %v383, 104
    %v766 = vpop.permute.xlu0 %765
    %767 = vrot.lane.b32.xlu0 %v386, 104
    %v768 = vpop.permute.xlu0 %767
    %769 = vrot.lane.b32.xlu0 %v383, 72
    %v770 = vpop.permute.xlu0 %769
    %771 = vrot.lane.b32.xlu0 %v386, 72
    %v772 = vpop.permute.xlu0 %771
    %v773 = vsel %vm82, %v766, 0
    %v775 = vsel %vm82, %v768, 0
    %v777 = vsel %vm82, %v770, 0
    %v779 = vsel %vm82, %v772, 0
    %781 = vmatpush.xpose.msra.mxu0 0.0
    %782 = vmatpush.xpose.msra.mxu0 0.0
    %783 = vmatpush.xpose.msra.mxu0 0.0
    %784 = vmatpush.xpose.msra.mxu0 0.0
    %785 = vmatpush.xpose.msra.mxu0 0.0
    %786 = vmatpush.xpose.msra.mxu0 0.0
    %787 = vmatpush.xpose.msra.mxu0 0.0
    %788 = vmatpush.xpose.msra.mxu0 0.0
    %789 = vmatpush.xpose.msra.mxu0 0.0
    %790 = vmatpush.xpose.msra.mxu0 0.0
    %791 = vmatpush.xpose.msra.mxu0 0.0
    %792 = vmatpush.xpose.msra.mxu0 0.0
    %793 = vmatpush.xpose.msra.mxu0 0.0
    %794 = vmatpush.xpose.msra.mxu0 0.0
    %795 = vmatpush.xpose.msra.mxu0 %v779
    %796 = vmatpush.xpose.msra.mxu0 %v777
    %797 = vmatmul.f32.gmra.mxu0 %v773
    %v798 = vpop.f32.mrf.mxu0
    %v799 = vadd.f32 0.0, %v798
    %800 = vmatmul.f32.gmra.mxu0 %v775
    %v801 = vpop.f32.mrf.mxu0
    %v802 = vadd.f32 0.0, %v801
    %803 = vdwg.mxu0
    %v804 = vmul.f32 %v799, 0.35355338
    %v805 = vmul.f32 %v802, 0.35355338
    %v806 = vadd.f32 %v804, %v348
    %v807 = vadd.f32 %v805, %v349
    %v808 = vsel %vm429, %v806, -inf
    %809 = vmax.xlane.f32.xlu0 %v808
    %v810 = vpop.xlane.xlu0 %809
    %v811 = vsel %vm429, %v807, -inf
    %812 = vmax.xlane.f32.xlu0 %v811
    %v813 = vpop.xlane.xlu0 %812
    %v814 = vsub.f32 %v806, %v810
    %v815 = vsub.f32 %v807, %v813
    %v816 = vmul.f32 %v814, 1.442695
    %v817 = vpow.pop %v816
    %v818 = vmul.f32 %v815, 1.442695
    %v819 = vpow.pop %v818
    %v820 = vsel %vm429, %v817, 0.0
    %821 = vadd.xlane.f32.xlu0 %v820
    %v822 = vpop.xlane.xlu0 %821
    %v823 = vsel %vm429, %v819, 0.0
    %824 = vadd.xlane.f32.xlu0 %v823
    %v825 = vpop.xlane.xlu0 %824
    %v826 = vrcp.pop %v822
    %v827 = vmul.f32 %v822, %v826
    %v828 = vsub.f32 1.0, %v827
    %v829 = vmul.f32 %v826, %v828
    %v830 = vadd.f32 %v826, %v829
    %vm831 = vweird.f32 %v822
    %vm832 = vweird.f32 %v826
    %vm833 = vmor %vm831, %vm832
    %v834 = vsel %vm833, %v826, %v830
    %v835 = vand.u32 2147483647, %v822
    %vm836 = vcmp.eq.f32.partialorder %v835, 8.507059e+37
    %v837 = vand.u32 %v822, 2147483648
    %v838 = vor.u32 1.1754944e-38, %v837
    %v839 = vsel %vm836, %v838, %v834
    %v840 = vmul.f32 %v817, %v839
    %v841 = vrcp.pop %v825
    %v842 = vmul.f32 %v825, %v841
    %v843 = vsub.f32 1.0, %v842
    %v844 = vmul.f32 %v841, %v843
    %v845 = vadd.f32 %v841, %v844
    %vm846 = vweird.f32 %v825
    %vm847 = vweird.f32 %v841
    %vm848 = vmor %vm846, %vm847
    %v849 = vsel %vm848, %v841, %v845
    %v850 = vand.u32 2147483647, %v825
    %vm851 = vcmp.eq.f32.partialorder %v850, 8.507059e+37
    %v852 = vand.u32 %v825, 2147483648
    %v853 = vor.u32 1.1754944e-38, %v852
    %v854 = vsel %vm851, %v853, %v849
    %v855 = vmul.f32 %v819, %v854
    %856 = vrot.lane.b32.xlu0 %v383, 40
    %v857 = vpop.permute.xlu0 %856
    %858 = vrot.lane.b32.xlu0 %v386, 40
    %v859 = vpop.permute.xlu0 %858
    %v863 = vsel %vm429, %v840, 0
    %v866 = vsel %vm429, %v855, 0
    %868 = vmatpush.msra.mxu0 0.0
    %869 = vmatpush.msra.mxu0 0.0
    %870 = vmatpush.msra.mxu0 0.0
    %871 = vmatpush.msra.mxu0 0.0
    %872 = vmatpush.msra.mxu0 0.0
    %873 = vmatpush.msra.mxu0 0.0
    %874 = vmatpush.msra.mxu0 0.0
    %875 = vmatpush.msra.mxu0 0.0
    %876 = vmatpush.msra.mxu0 0.0
    %877 = vmatpush.msra.mxu0 0.0
    %878 = vmatpush.msra.mxu0 0.0
    %879 = vmatpush.msra.mxu0 0.0
    %880 = vmatpush.msra.mxu0 0.0
    %881 = vmatpush.msra.mxu0 0.0
    %882 = vmatpush.msra.mxu0 %v859
    %883 = vmatpush.msra.mxu0 %v857
    %884 = vmatmul.f32.gmra.mxu0 %v863
    %v885 = vpop.f32.mrf.mxu0
    %v886 = vadd.f32 0.0, %v885
    %887 = vmatmul.f32.gmra.mxu0 %v866
    %v888 = vpop.f32.mrf.mxu0
    %v889 = vadd.f32 0.0, %v888
    %890 = vdwg.mxu0
    %893 = vrot.lane.b32.xlu0 %v634, 8
    %v894 = vpop.permute.xlu0 %893
    %895 = vrot.lane.b32.xlu0 %v637, 8
    %v896 = vpop.permute.xlu0 %895
    %901 = vrot.lane.b32.xlu0 %v760, 16
    %v902 = vpop.permute.xlu0 %901
    %903 = vrot.lane.b32.xlu0 %v763, 16
    %v904 = vpop.permute.xlu0 %903
    %909 = vrot.lane.b32.xlu0 %v886, 24
    %v910 = vpop.permute.xlu0 %909
    %911 = vrot.lane.b32.xlu0 %v889, 24
    %v912 = vpop.permute.xlu0 %911
    %v915 = vsel %vm82, %v508, %v894
    %v916 = vsel %vm82, %v511, %v896
    %v917 = vsel %vm429, %v915, %v902
    %v918 = vsel %vm429, %v916, %v904
    %vm919 = vcmask 195584
    %v920 = vsel %vm919, %v917, %v910
    %v921 = vsel %vm919, %v918, %v912
    %v922 = vld [vmem:[#allocation7] sm:$0xff]
    %v923 = vld [vmem:[#allocation7 + $0x8] sm:$0xff]
    %v924 = vld [vmem:[#allocation7 + $0x10] sm:$0xff]
    %v925 = vld [vmem:[#allocation7 + $0x18] sm:$0xff]
    %v926 = vld [vmem:[%s6] sm:$0x1]
    %v928 = vperm.slane %v926, 0
    %v931 = vsel %vm358, %v920, 0
    %v934 = vsel %vm358, %v921, 0
    %936 = vmatpush.msra.mxu0 0.0
    %937 = vmatpush.msra.mxu0 0.0
    %938 = vmatpush.msra.mxu0 0.0
    %939 = vmatpush.msra.mxu0 0.0
    %940 = vmatpush.msra.mxu0 0.0
    %941 = vmatpush.msra.mxu0 0.0
    %942 = vmatpush.msra.mxu0 0.0
    %943 = vmatpush.msra.mxu0 0.0
    %944 = vmatpush.msra.mxu0 0.0
    %945 = vmatpush.msra.mxu0 0.0
    %946 = vmatpush.msra.mxu0 0.0
    %947 = vmatpush.msra.mxu0 0.0
    %948 = vmatpush.msra.mxu0 %v925
    %949 = vmatpush.msra.mxu0 %v924
    %950 = vmatpush.msra.mxu0 %v923
    %951 = vmatpush.msra.mxu0 %v922
    %952 = vmatmul.f32.gmra.mxu0 %v931
    %v953 = vpop.f32.mrf.mxu0
    %v954 = vadd.f32 %v928, %v953
    %955 = vmatmul.f32.gmra.mxu0 %v934
    %v956 = vpop.f32.mrf.mxu0
    %v957 = vadd.f32 %v928, %v956
    %958 = vdwg.mxu0
    %s959 = scalar_lea.vmem [#allocation5], 32
    %v960 = vld [vmem:[%s959] sm:$0xff]
    %v961 = vld [vmem:[%s959 + $0x8] sm:$0xff]
    %v962 = vld [vmem:[%s959 + $0x10] sm:$0xff]
    %v963 = vld [vmem:[%s959 + $0x18] sm:$0xff]
    %s964 = scalar_lea.vmem %s4, 1
    %v965 = vld [vmem:[%s964] sm:$0x1]
    %v967 = vperm.slane %v965, 0
    %v970 = vsel %vm358, %v954, 0
    %v973 = vsel %vm358, %v957, 0
    %975 = vmatpush.msra.mxu0 0.0
    %976 = vmatpush.msra.mxu0 0.0
    %977 = vmatpush.msra.mxu0 0.0
    %978 = vmatpush.msra.mxu0 0.0
    %979 = vmatpush.msra.mxu0 0.0
    %980 = vmatpush.msra.mxu0 0.0
    %981 = vmatpush.msra.mxu0 0.0
    %982 = vmatpush.msra.mxu0 0.0
    %983 = vmatpush.msra.mxu0 0.0
    %984 = vmatpush.msra.mxu0 0.0
    %985 = vmatpush.msra.mxu0 0.0
    %986 = vmatpush.msra.mxu0 0.0
    %987 = vmatpush.msra.mxu0 %v963
    %988 = vmatpush.msra.mxu0 %v962
    %989 = vmatpush.msra.mxu0 %v961
    %990 = vmatpush.msra.mxu0 %v960
    %991 = vmatmul.f32.gmra.mxu0 %v970
    %v992 = vpop.f32.mrf.mxu0
    %v993 = vadd.f32 %v967, %v992
    %994 = vmatmul.f32.gmra.mxu0 %v973
    %v995 = vpop.f32.mrf.mxu0
    %v996 = vadd.f32 %v967, %v995
    %997 = vdwg.mxu0
    %1000 = vrot.lane.b32.xlu0 %v993, 96
    %v1001 = vpop.permute.xlu0 %1000
    %1002 = vrot.lane.b32.xlu0 %v996, 96
    %v1003 = vpop.permute.xlu0 %1002
    %v1004 = vsel %vm82, %v993, 0
    %v1006 = vsel %vm82, %v996, 0
    %v1008 = vsel %vm82, %v1001, 0
    %v1010 = vsel %vm82, %v1003, 0
    %1012 = vmatpush.xpose.msra.mxu0 0.0
    %1013 = vmatpush.xpose.msra.mxu0 0.0
    %1014 = vmatpush.xpose.msra.mxu0 0.0
    %1015 = vmatpush.xpose.msra.mxu0 0.0
    %1016 = vmatpush.xpose.msra.mxu0 0.0
    %1017 = vmatpush.xpose.msra.mxu0 0.0
    %1018 = vmatpush.xpose.msra.mxu0 0.0
    %1019 = vmatpush.xpose.msra.mxu0 0.0
    %1020 = vmatpush.xpose.msra.mxu0 0.0
    %1021 = vmatpush.xpose.msra.mxu0 0.0
    %1022 = vmatpush.xpose.msra.mxu0 0.0
    %1023 = vmatpush.xpose.msra.mxu0 0.0
    %1024 = vmatpush.xpose.msra.mxu0 0.0
    %1025 = vmatpush.xpose.msra.mxu0 0.0
    %1026 = vmatpush.xpose.msra.mxu0 %v1010
    %1027 = vmatpush.xpose.msra.mxu0 %v1008
    %1028 = vmatmul.f32.gmra.mxu0 %v1004
    %v1029 = vpop.f32.mrf.mxu0
    %v1030 = vadd.f32 0.0, %v1029
    %1031 = vmatmul.f32.gmra.mxu0 %v1006
    %v1032 = vpop.f32.mrf.mxu0
    %v1033 = vadd.f32 0.0, %v1032
    %1034 = vdwg.mxu0
    %v1035 = vmul.f32 %v1030, 0.35355338
    %v1036 = vmul.f32 %v1033, 0.35355338
    %v1037 = vadd.f32 %v1035, %v348
    %v1038 = vadd.f32 %v1036, %v349
    %v1039 = vsel %vm429, %v1037, -inf
    %1040 = vmax.xlane.f32.xlu0 %v1039
    %v1041 = vpop.xlane.xlu0 %1040
    %v1042 = vsel %vm429, %v1038, -inf
    %1043 = vmax.xlane.f32.xlu0 %v1042
    %v1044 = vpop.xlane.xlu0 %1043
    %v1045 = vsub.f32 %v1037, %v1041
    %v1046 = vsub.f32 %v1038, %v1044
    %v1047 = vmul.f32 %v1045, 1.442695
    %v1048 = vpow.pop %v1047
    %v1049 = vmul.f32 %v1046, 1.442695
    %v1050 = vpow.pop %v1049
    %v1051 = vsel %vm429, %v1048, 0.0
    %1052 = vadd.xlane.f32.xlu0 %v1051
    %v1053 = vpop.xlane.xlu0 %1052
    %v1054 = vsel %vm429, %v1050, 0.0
    %1055 = vadd.xlane.f32.xlu0 %v1054
    %v1056 = vpop.xlane.xlu0 %1055
    %v1057 = vrcp.pop %v1053
    %v1058 = vmul.f32 %v1053, %v1057
    %v1059 = vsub.f32 1.0, %v1058
    %v1060 = vmul.f32 %v1057, %v1059
    %v1061 = vadd.f32 %v1057, %v1060
    %vm1062 = vweird.f32 %v1053
    %vm1063 = vweird.f32 %v1057
    %vm1064 = vmor %vm1062, %vm1063
    %v1065 = vsel %vm1064, %v1057, %v1061
    %v1066 = vand.u32 2147483647, %v1053
    %vm1067 = vcmp.eq.f32.partialorder %v1066, 8.507059e+37
    %v1068 = vand.u32 %v1053, 2147483648
    %v1069 = vor.u32 1.1754944e-38, %v1068
    %v1070 = vsel %vm1067, %v1069, %v1065
    %v1071 = vmul.f32 %v1048, %v1070
    %v1072 = vrcp.pop %v1056
    %v1073 = vmul.f32 %v1056, %v1072
    %v1074 = vsub.f32 1.0, %v1073
    %v1075 = vmul.f32 %v1072, %v1074
    %v1076 = vadd.f32 %v1072, %v1075
    %vm1077 = vweird.f32 %v1056
    %vm1078 = vweird.f32 %v1072
    %vm1079 = vmor %vm1077, %vm1078
    %v1080 = vsel %vm1079, %v1072, %v1076
    %v1081 = vand.u32 2147483647, %v1056
    %vm1082 = vcmp.eq.f32.partialorder %v1081, 8.507059e+37
    %v1083 = vand.u32 %v1056, 2147483648
    %v1084 = vor.u32 1.1754944e-38, %v1083
    %v1085 = vsel %vm1082, %v1084, %v1080
    %v1086 = vmul.f32 %v1050, %v1085
    %1087 = vrot.lane.b32.xlu0 %v993, 64
    %v1088 = vpop.permute.xlu0 %1087
    %1089 = vrot.lane.b32.xlu0 %v996, 64
    %v1090 = vpop.permute.xlu0 %1089
    %v1094 = vsel %vm429, %v1071, 0
    %v1097 = vsel %vm429, %v1086, 0
    %1099 = vmatpush.msra.mxu0 0.0
    %1100 = vmatpush.msra.mxu0 0.0
    %1101 = vmatpush.msra.mxu0 0.0
    %1102 = vmatpush.msra.mxu0 0.0
    %1103 = vmatpush.msra.mxu0 0.0
    %1104 = vmatpush.msra.mxu0 0.0
    %1105 = vmatpush.msra.mxu0 0.0
    %1106 = vmatpush.msra.mxu0 0.0
    %1107 = vmatpush.msra.mxu0 0.0
    %1108 = vmatpush.msra.mxu0 0.0
    %1109 = vmatpush.msra.mxu0 0.0
    %1110 = vmatpush.msra.mxu0 0.0
    %1111 = vmatpush.msra.mxu0 0.0
    %1112 = vmatpush.msra.mxu0 0.0
    %1113 = vmatpush.msra.mxu0 %v1090
    %1114 = vmatpush.msra.mxu0 %v1088
    %1115 = vmatmul.f32.gmra.mxu0 %v1094
    %v1116 = vpop.f32.mrf.mxu0
    %v1117 = vadd.f32 0.0, %v1116
    %1118 = vmatmul.f32.gmra.mxu0 %v1097
    %v1119 = vpop.f32.mrf.mxu0
    %v1120 = vadd.f32 0.0, %v1119
    %1121 = vdwg.mxu0
    %1122 = vrot.lane.b32.xlu0 %v993, 120
    %v1123 = vpop.permute.xlu0 %1122
    %1124 = vrot.lane.b32.xlu0 %v996, 120
    %v1125 = vpop.permute.xlu0 %1124
    %1126 = vrot.lane.b32.xlu0 %v993, 88
    %v1127 = vpop.permute.xlu0 %1126
    %1128 = vrot.lane.b32.xlu0 %v996, 88
    %v1129 = vpop.permute.xlu0 %1128
    %v1130 = vsel %vm82, %v1123, 0
    %v1132 = vsel %vm82, %v1125, 0
    %v1134 = vsel %vm82, %v1127, 0
    %v1136 = vsel %vm82, %v1129, 0
    %1138 = vmatpush.xpose.msra.mxu0 0.0
    %1139 = vmatpush.xpose.msra.mxu0 0.0
    %1140 = vmatpush.xpose.msra.mxu0 0.0
    %1141 = vmatpush.xpose.msra.mxu0 0.0
    %1142 = vmatpush.xpose.msra.mxu0 0.0
    %1143 = vmatpush.xpose.msra.mxu0 0.0
    %1144 = vmatpush.xpose.msra.mxu0 0.0
    %1145 = vmatpush.xpose.msra.mxu0 0.0
    %1146 = vmatpush.xpose.msra.mxu0 0.0
    %1147 = vmatpush.xpose.msra.mxu0 0.0
    %1148 = vmatpush.xpose.msra.mxu0 0.0
    %1149 = vmatpush.xpose.msra.mxu0 0.0
    %1150 = vmatpush.xpose.msra.mxu0 0.0
    %1151 = vmatpush.xpose.msra.mxu0 0.0
    %1152 = vmatpush.xpose.msra.mxu0 %v1136
    %1153 = vmatpush.xpose.msra.mxu0 %v1134
    %1154 = vmatmul.f32.gmra.mxu0 %v1130
    %v1155 = vpop.f32.mrf.mxu0
    %v1156 = vadd.f32 0.0, %v1155
    %1157 = vmatmul.f32.gmra.mxu0 %v1132
    %v1158 = vpop.f32.mrf.mxu0
    %v1159 = vadd.f32 0.0, %v1158
    %1160 = vdwg.mxu0
    %v1161 = vmul.f32 %v1156, 0.35355338
    %v1162 = vmul.f32 %v1159, 0.35355338
    %v1163 = vadd.f32 %v1161, %v348
    %v1164 = vadd.f32 %v1162, %v349
    %v1165 = vsel %vm429, %v1163, -inf
    %1166 = vmax.xlane.f32.xlu0 %v1165
    %v1167 = vpop.xlane.xlu0 %1166
    %v1168 = vsel %vm429, %v1164, -inf
    %1169 = vmax.xlane.f32.xlu0 %v1168
    %v1170 = vpop.xlane.xlu0 %1169
    %v1171 = vsub.f32 %v1163, %v1167
    %v1172 = vsub.f32 %v1164, %v1170
    %v1173 = vmul.f32 %v1171, 1.442695
    %v1174 = vpow.pop %v1173
    %v1175 = vmul.f32 %v1172, 1.442695
    %v1176 = vpow.pop %v1175
    %v1177 = vsel %vm429, %v1174, 0.0
    %1178 = vadd.xlane.f32.xlu0 %v1177
    %v1179 = vpop.xlane.xlu0 %1178
    %v1180 = vsel %vm429, %v1176, 0.0
    %1181 = vadd.xlane.f32.xlu0 %v1180
    %v1182 = vpop.xlane.xlu0 %1181
    %v1183 = vrcp.pop %v1179
    %v1184 = vmul.f32 %v1179, %v1183
    %v1185 = vsub.f32 1.0, %v1184
    %v1186 = vmul.f32 %v1183, %v1185
    %v1187 = vadd.f32 %v1183, %v1186
    %vm1188 = vweird.f32 %v1179
    %vm1189 = vweird.f32 %v1183
    %vm1190 = vmor %vm1188, %vm1189
    %v1191 = vsel %vm1190, %v1183, %v1187
    %v1192 = vand.u32 2147483647, %v1179
    %vm1193 = vcmp.eq.f32.partialorder %v1192, 8.507059e+37
    %v1194 = vand.u32 %v1179, 2147483648
    %v1195 = vor.u32 1.1754944e-38, %v1194
    %v1196 = vsel %vm1193, %v1195, %v1191
    %v1197 = vmul.f32 %v1174, %v1196
    %v1198 = vrcp.pop %v1182
    %v1199 = vmul.f32 %v1182, %v1198
    %v1200 = vsub.f32 1.0, %v1199
    %v1201 = vmul.f32 %v1198, %v1200
    %v1202 = vadd.f32 %v1198, %v1201
    %vm1203 = vweird.f32 %v1182
    %vm1204 = vweird.f32 %v1198
    %vm1205 = vmor %vm1203, %vm1204
    %v1206 = vsel %vm1205, %v1198, %v1202
    %v1207 = vand.u32 2147483647, %v1182
    %vm1208 = vcmp.eq.f32.partialorder %v1207, 8.507059e+37
    %v1209 = vand.u32 %v1182, 2147483648
    %v1210 = vor.u32 1.1754944e-38, %v1209
    %v1211 = vsel %vm1208, %v1210, %v1206
    %v1212 = vmul.f32 %v1176, %v1211
    %1213 = vrot.lane.b32.xlu0 %v993, 56
    %v1214 = vpop.permute.xlu0 %1213
    %1215 = vrot.lane.b32.xlu0 %v996, 56
    %v1216 = vpop.permute.xlu0 %1215
    %v1220 = vsel %vm429, %v1197, 0
    %v1223 = vsel %vm429, %v1212, 0
    %1225 = vmatpush.msra.mxu0 0.0
    %1226 = vmatpush.msra.mxu0 0.0
    %1227 = vmatpush.msra.mxu0 0.0
    %1228 = vmatpush.msra.mxu0 0.0
    %1229 = vmatpush.msra.mxu0 0.0
    %1230 = vmatpush.msra.mxu0 0.0
    %1231 = vmatpush.msra.mxu0 0.0
    %1232 = vmatpush.msra.mxu0 0.0
    %1233 = vmatpush.msra.mxu0 0.0
    %1234 = vmatpush.msra.mxu0 0.0
    %1235 = vmatpush.msra.mxu0 0.0
    %1236 = vmatpush.msra.mxu0 0.0
    %1237 = vmatpush.msra.mxu0 0.0
    %1238 = vmatpush.msra.mxu0 0.0
    %1239 = vmatpush.msra.mxu0 %v1216
    %1240 = vmatpush.msra.mxu0 %v1214
    %1241 = vmatmul.f32.gmra.mxu0 %v1220
    %v1242 = vpop.f32.mrf.mxu0
    %v1243 = vadd.f32 0.0, %v1242
    %1244 = vmatmul.f32.gmra.mxu0 %v1223
    %v1245 = vpop.f32.mrf.mxu0
    %v1246 = vadd.f32 0.0, %v1245
    %1247 = vdwg.mxu0
    %1248 = vrot.lane.b32.xlu0 %v993, 112
    %v1249 = vpop.permute.xlu0 %1248
    %1250 = vrot.lane.b32.xlu0 %v996, 112
    %v1251 = vpop.permute.xlu0 %1250
    %1252 = vrot.lane.b32.xlu0 %v993, 80
    %v1253 = vpop.permute.xlu0 %1252
    %1254 = vrot.lane.b32.xlu0 %v996, 80
    %v1255 = vpop.permute.xlu0 %1254
    %v1256 = vsel %vm82, %v1249, 0
    %v1258 = vsel %vm82, %v1251, 0
    %v1260 = vsel %vm82, %v1253, 0
    %v1262 = vsel %vm82, %v1255, 0
    %1264 = vmatpush.xpose.msra.mxu0 0.0
    %1265 = vmatpush.xpose.msra.mxu0 0.0
    %1266 = vmatpush.xpose.msra.mxu0 0.0
    %1267 = vmatpush.xpose.msra.mxu0 0.0
    %1268 = vmatpush.xpose.msra.mxu0 0.0
    %1269 = vmatpush.xpose.msra.mxu0 0.0
    %1270 = vmatpush.xpose.msra.mxu0 0.0
    %1271 = vmatpush.xpose.msra.mxu0 0.0
    %1272 = vmatpush.xpose.msra.mxu0 0.0
    %1273 = vmatpush.xpose.msra.mxu0 0.0
    %1274 = vmatpush.xpose.msra.mxu0 0.0
    %1275 = vmatpush.xpose.msra.mxu0 0.0
    %1276 = vmatpush.xpose.msra.mxu0 0.0
    %1277 = vmatpush.xpose.msra.mxu0 0.0
    %1278 = vmatpush.xpose.msra.mxu0 %v1262
    %1279 = vmatpush.xpose.msra.mxu0 %v1260
    %1280 = vmatmul.f32.gmra.mxu0 %v1256
    %v1281 = vpop.f32.mrf.mxu0
    %v1282 = vadd.f32 0.0, %v1281
    %1283 = vmatmul.f32.gmra.mxu0 %v1258
    %v1284 = vpop.f32.mrf.mxu0
    %v1285 = vadd.f32 0.0, %v1284
    %1286 = vdwg.mxu0
    %v1287 = vmul.f32 %v1282, 0.35355338
    %v1288 = vmul.f32 %v1285, 0.35355338
    %v1289 = vadd.f32 %v1287, %v348
    %v1290 = vadd.f32 %v1288, %v349
    %v1291 = vsel %vm429, %v1289, -inf
    %1292 = vmax.xlane.f32.xlu0 %v1291
    %v1293 = vpop.xlane.xlu0 %1292
    %v1294 = vsel %vm429, %v1290, -inf
    %1295 = vmax.xlane.f32.xlu0 %v1294
    %v1296 = vpop.xlane.xlu0 %1295
    %v1297 = vsub.f32 %v1289, %v1293
    %v1298 = vsub.f32 %v1290, %v1296
    %v1299 = vmul.f32 %v1297, 1.442695
    %v1300 = vpow.pop %v1299
    %v1301 = vmul.f32 %v1298, 1.442695
    %v1302 = vpow.pop %v1301
    %v1303 = vsel %vm429, %v1300, 0.0
    %1304 = vadd.xlane.f32.xlu0 %v1303
    %v1305 = vpop.xlane.xlu0 %1304
    %v1306 = vsel %vm429, %v1302, 0.0
    %1307 = vadd.xlane.f32.xlu0 %v1306
    %v1308 = vpop.xlane.xlu0 %1307
    %v1309 = vrcp.pop %v1305
    %v1310 = vmul.f32 %v1305, %v1309
    %v1311 = vsub.f32 1.0, %v1310
    %v1312 = vmul.f32 %v1309, %v1311
    %v1313 = vadd.f32 %v1309, %v1312
    %vm1314 = vweird.f32 %v1305
    %vm1315 = vweird.f32 %v1309
    %vm1316 = vmor %vm1314, %vm1315
    %v1317 = vsel %vm1316, %v1309, %v1313
    %v1318 = vand.u32 2147483647, %v1305
    %vm1319 = vcmp.eq.f32.partialorder %v1318, 8.507059e+37
    %v1320 = vand.u32 %v1305, 2147483648
    %v1321 = vor.u32 1.1754944e-38, %v1320
    %v1322 = vsel %vm1319, %v1321, %v1317
    %v1323 = vmul.f32 %v1300, %v1322
    %v1324 = vrcp.pop %v1308
    %v1325 = vmul.f32 %v1308, %v1324
    %v1326 = vsub.f32 1.0, %v1325
    %v1327 = vmul.f32 %v1324, %v1326
    %v1328 = vadd.f32 %v1324, %v1327
    %vm1329 = vweird.f32 %v1308
    %vm1330 = vweird.f32 %v1324
    %vm1331 = vmor %vm1329, %vm1330
    %v1332 = vsel %vm1331, %v1324, %v1328
    %v1333 = vand.u32 2147483647, %v1308
    %vm1334 = vcmp.eq.f32.partialorder %v1333, 8.507059e+37
    %v1335 = vand.u32 %v1308, 2147483648
    %v1336 = vor.u32 1.1754944e-38, %v1335
    %v1337 = vsel %vm1334, %v1336, %v1332
    %v1338 = vmul.f32 %v1302, %v1337
    %1339 = vrot.lane.b32.xlu0 %v993, 48
    %v1340 = vpop.permute.xlu0 %1339
    %1341 = vrot.lane.b32.xlu0 %v996, 48
    %v1342 = vpop.permute.xlu0 %1341
    %v1346 = vsel %vm429, %v1323, 0
    %v1349 = vsel %vm429, %v1338, 0
    %1351 = vmatpush.msra.mxu0 0.0
    %1352 = vmatpush.msra.mxu0 0.0
    %1353 = vmatpush.msra.mxu0 0.0
    %1354 = vmatpush.msra.mxu0 0.0
    %1355 = vmatpush.msra.mxu0 0.0
    %1356 = vmatpush.msra.mxu0 0.0
    %1357 = vmatpush.msra.mxu0 0.0
    %1358 = vmatpush.msra.mxu0 0.0
    %1359 = vmatpush.msra.mxu0 0.0
    %1360 = vmatpush.msra.mxu0 0.0
    %1361 = vmatpush.msra.mxu0 0.0
    %1362 = vmatpush.msra.mxu0 0.0
    %1363 = vmatpush.msra.mxu0 0.0
    %1364 = vmatpush.msra.mxu0 0.0
    %1365 = vmatpush.msra.mxu0 %v1342
    %1366 = vmatpush.msra.mxu0 %v1340
    %1367 = vmatmul.f32.gmra.mxu0 %v1346
    %v1368 = vpop.f32.mrf.mxu0
    %v1369 = vadd.f32 0.0, %v1368
    %1370 = vmatmul.f32.gmra.mxu0 %v1349
    %v1371 = vpop.f32.mrf.mxu0
    %v1372 = vadd.f32 0.0, %v1371
    %1373 = vdwg.mxu0
    %1374 = vrot.lane.b32.xlu0 %v993, 104
    %v1375 = vpop.permute.xlu0 %1374
    %1376 = vrot.lane.b32.xlu0 %v996, 104
    %v1377 = vpop.permute.xlu0 %1376
    %1378 = vrot.lane.b32.xlu0 %v993, 72
    %v1379 = vpop.permute.xlu0 %1378
    %1380 = vrot.lane.b32.xlu0 %v996, 72
    %v1381 = vpop.permute.xlu0 %1380
    %v1382 = vsel %vm82, %v1375, 0
    %v1384 = vsel %vm82, %v1377, 0
    %v1386 = vsel %vm82, %v1379, 0
    %v1388 = vsel %vm82, %v1381, 0
    %1390 = vmatpush.xpose.msra.mxu0 0.0
    %1391 = vmatpush.xpose.msra.mxu0 0.0
    %1392 = vmatpush.xpose.msra.mxu0 0.0
    %1393 = vmatpush.xpose.msra.mxu0 0.0
    %1394 = vmatpush.xpose.msra.mxu0 0.0
    %1395 = vmatpush.xpose.msra.mxu0 0.0
    %1396 = vmatpush.xpose.msra.mxu0 0.0
    %1397 = vmatpush.xpose.msra.mxu0 0.0
    %1398 = vmatpush.xpose.msra.mxu0 0.0
    %1399 = vmatpush.xpose.msra.mxu0 0.0
    %1400 = vmatpush.xpose.msra.mxu0 0.0
    %1401 = vmatpush.xpose.msra.mxu0 0.0
    %1402 = vmatpush.xpose.msra.mxu0 0.0
    %1403 = vmatpush.xpose.msra.mxu0 0.0
    %1404 = vmatpush.xpose.msra.mxu0 %v1388
    %1405 = vmatpush.xpose.msra.mxu0 %v1386
    %1406 = vmatmul.f32.gmra.mxu0 %v1382
    %v1407 = vpop.f32.mrf.mxu0
    %v1408 = vadd.f32 0.0, %v1407
    %1409 = vmatmul.f32.gmra.mxu0 %v1384
    %v1410 = vpop.f32.mrf.mxu0
    %v1411 = vadd.f32 0.0, %v1410
    %1412 = vdwg.mxu0
    %v1413 = vmul.f32 %v1408, 0.35355338
    %v1414 = vmul.f32 %v1411, 0.35355338
    %v1415 = vadd.f32 %v1413, %v348
    %v1416 = vadd.f32 %v1414, %v349
    %v1417 = vsel %vm429, %v1415, -inf
    %1418 = vmax.xlane.f32.xlu0 %v1417
    %v1419 = vpop.xlane.xlu0 %1418
    %v1420 = vsel %vm429, %v1416, -inf
    %1421 = vmax.xlane.f32.xlu0 %v1420
    %v1422 = vpop.xlane.xlu0 %1421
    %v1423 = vsub.f32 %v1415, %v1419
    %v1424 = vsub.f32 %v1416, %v1422
    %v1425 = vmul.f32 %v1423, 1.442695
    %v1426 = vpow.pop %v1425
    %v1427 = vmul.f32 %v1424, 1.442695
    %v1428 = vpow.pop %v1427
    %v1429 = vsel %vm429, %v1426, 0.0
    %1430 = vadd.xlane.f32.xlu0 %v1429
    %v1431 = vpop.xlane.xlu0 %1430
    %v1432 = vsel %vm429, %v1428, 0.0
    %1433 = vadd.xlane.f32.xlu0 %v1432
    %v1434 = vpop.xlane.xlu0 %1433
    %v1435 = vrcp.pop %v1431
    %v1436 = vmul.f32 %v1431, %v1435
    %v1437 = vsub.f32 1.0, %v1436
    %v1438 = vmul.f32 %v1435, %v1437
    %v1439 = vadd.f32 %v1435, %v1438
    %vm1440 = vweird.f32 %v1431
    %vm1441 = vweird.f32 %v1435
    %vm1442 = vmor %vm1440, %vm1441
    %v1443 = vsel %vm1442, %v1435, %v1439
    %v1444 = vand.u32 2147483647, %v1431
    %vm1445 = vcmp.eq.f32.partialorder %v1444, 8.507059e+37
    %v1446 = vand.u32 %v1431, 2147483648
    %v1447 = vor.u32 1.1754944e-38, %v1446
    %v1448 = vsel %vm1445, %v1447, %v1443
    %v1449 = vmul.f32 %v1426, %v1448
    %v1450 = vrcp.pop %v1434
    %v1451 = vmul.f32 %v1434, %v1450
    %v1452 = vsub.f32 1.0, %v1451
    %v1453 = vmul.f32 %v1450, %v1452
    %v1454 = vadd.f32 %v1450, %v1453
    %vm1455 = vweird.f32 %v1434
    %vm1456 = vweird.f32 %v1450
    %vm1457 = vmor %vm1455, %vm1456
    %v1458 = vsel %vm1457, %v1450, %v1454
    %v1459 = vand.u32 2147483647, %v1434
    %vm1460 = vcmp.eq.f32.partialorder %v1459, 8.507059e+37
    %v1461 = vand.u32 %v1434, 2147483648
    %v1462 = vor.u32 1.1754944e-38, %v1461
    %v1463 = vsel %vm1460, %v1462, %v1458
    %v1464 = vmul.f32 %v1428, %v1463
    %1465 = vrot.lane.b32.xlu0 %v993, 40
    %v1466 = vpop.permute.xlu0 %1465
    %1467 = vrot.lane.b32.xlu0 %v996, 40
    %v1468 = vpop.permute.xlu0 %1467
    %v1472 = vsel %vm429, %v1449, 0
    %v1475 = vsel %vm429, %v1464, 0
    %1477 = vmatpush.msra.mxu0 0.0
    %1478 = vmatpush.msra.mxu0 0.0
    %1479 = vmatpush.msra.mxu0 0.0
    %1480 = vmatpush.msra.mxu0 0.0
    %1481 = vmatpush.msra.mxu0 0.0
    %1482 = vmatpush.msra.mxu0 0.0
    %1483 = vmatpush.msra.mxu0 0.0
    %1484 = vmatpush.msra.mxu0 0.0
    %1485 = vmatpush.msra.mxu0 0.0
    %1486 = vmatpush.msra.mxu0 0.0
    %1487 = vmatpush.msra.mxu0 0.0
    %1488 = vmatpush.msra.mxu0 0.0
    %1489 = vmatpush.msra.mxu0 0.0
    %1490 = vmatpush.msra.mxu0 0.0
    %1491 = vmatpush.msra.mxu0 %v1468
    %1492 = vmatpush.msra.mxu0 %v1466
    %1493 = vmatmul.f32.gmra.mxu0 %v1472
    %v1494 = vpop.f32.mrf.mxu0
    %v1495 = vadd.f32 0.0, %v1494
    %1496 = vmatmul.f32.gmra.mxu0 %v1475
    %v1497 = vpop.f32.mrf.mxu0
    %v1498 = vadd.f32 0.0, %v1497
    %1499 = vdwg.mxu0
    %1502 = vrot.lane.b32.xlu0 %v1243, 8
    %v1503 = vpop.permute.xlu0 %1502
    %1504 = vrot.lane.b32.xlu0 %v1246, 8
    %v1505 = vpop.permute.xlu0 %1504
    %1510 = vrot.lane.b32.xlu0 %v1369, 16
    %v1511 = vpop.permute.xlu0 %1510
    %1512 = vrot.lane.b32.xlu0 %v1372, 16
    %v1513 = vpop.permute.xlu0 %1512
    %1518 = vrot.lane.b32.xlu0 %v1495, 24
    %v1519 = vpop.permute.xlu0 %1518
    %1520 = vrot.lane.b32.xlu0 %v1498, 24
    %v1521 = vpop.permute.xlu0 %1520
    %v1524 = vsel %vm82, %v1117, %v1503
    %v1525 = vsel %vm82, %v1120, %v1505
    %v1526 = vsel %vm429, %v1524, %v1511
    %v1527 = vsel %vm429, %v1525, %v1513
    %v1528 = vsel %vm919, %v1526, %v1519
    %v1529 = vsel %vm919, %v1527, %v1521
    %s1530 = scalar_lea.vmem [#allocation7], 32
    %v1531 = vld [vmem:[%s1530] sm:$0xff]
    %v1532 = vld [vmem:[%s1530 + $0x8] sm:$0xff]
    %v1533 = vld [vmem:[%s1530 + $0x10] sm:$0xff]
    %v1534 = vld [vmem:[%s1530 + $0x18] sm:$0xff]
    %s1535 = scalar_lea.vmem %s6, 1
    %v1536 = vld [vmem:[%s1535] sm:$0x1]
    %v1538 = vperm.slane %v1536, 0
    %v1541 = vsel %vm358, %v1528, 0
    %v1544 = vsel %vm358, %v1529, 0
    %1546 = vmatpush.msra.mxu0 0.0
    %1547 = vmatpush.msra.mxu0 0.0
    %1548 = vmatpush.msra.mxu0 0.0
    %1549 = vmatpush.msra.mxu0 0.0
    %1550 = vmatpush.msra.mxu0 0.0
    %1551 = vmatpush.msra.mxu0 0.0
    %1552 = vmatpush.msra.mxu0 0.0
    %1553 = vmatpush.msra.mxu0 0.0
    %1554 = vmatpush.msra.mxu0 0.0
    %1555 = vmatpush.msra.mxu0 0.0
    %1556 = vmatpush.msra.mxu0 0.0
    %1557 = vmatpush.msra.mxu0 0.0
    %1558 = vmatpush.msra.mxu0 %v1534
    %1559 = vmatpush.msra.mxu0 %v1533
    %1560 = vmatpush.msra.mxu0 %v1532
    %1561 = vmatpush.msra.mxu0 %v1531
    %1562 = vmatmul.f32.gmra.mxu0 %v1541
    %v1563 = vpop.f32.mrf.mxu0
    %v1564 = vadd.f32 %v1538, %v1563
    %1565 = vmatmul.f32.gmra.mxu0 %v1544
    %v1566 = vpop.f32.mrf.mxu0
    %v1567 = vadd.f32 %v1538, %v1566
    %1568 = vdwg.mxu0
    %v1569 = vld [vmem:[%s7] sm:$0xff]
    %v1570 = vld [vmem:[%s7 + $0x8] sm:$0xff]
    %v1571 = vld [vmem:[%s7 + $0x10] sm:$0xff]
    %v1572 = vld [vmem:[%s7 + $0x18] sm:$0xff]
    %v1573 = vld [vmem:[%s8] sm:$0x1]
    %v1575 = vperm.slane %v1573, 0
    %v1578 = vsel %vm358, %v1564, 0
    %v1581 = vsel %vm358, %v1567, 0
    %1583 = vmatpush.msra.mxu0 0.0
    %1584 = vmatpush.msra.mxu0 0.0
    %1585 = vmatpush.msra.mxu0 0.0
    %1586 = vmatpush.msra.mxu0 0.0
    %1587 = vmatpush.msra.mxu0 0.0
    %1588 = vmatpush.msra.mxu0 0.0
    %1589 = vmatpush.msra.mxu0 0.0
    %1590 = vmatpush.msra.mxu0 0.0
    %1591 = vmatpush.msra.mxu0 0.0
    %1592 = vmatpush.msra.mxu0 0.0
    %1593 = vmatpush.msra.mxu0 0.0
    %1594 = vmatpush.msra.mxu0 0.0
    %1595 = vmatpush.msra.mxu0 %v1572
    %1596 = vmatpush.msra.mxu0 %v1571
    %1597 = vmatpush.msra.mxu0 %v1570
    %1598 = vmatpush.msra.mxu0 %v1569
    %1599 = vmatmul.f32.gmra.mxu0 %v1578
    %v1600 = vpop.f32.mrf.mxu0
    %v1601 = vadd.f32 %v1575, %v1600
    %1602 = vmatmul.f32.gmra.mxu0 %v1581
    %v1603 = vpop.f32.mrf.mxu0
    %v1604 = vadd.f32 %v1575, %v1603
    %1605 = vdwg.mxu0
    %1606 = vst.msk [vmem:[#allocation8] sm:$0xff] %vm429, %v1601
    %1607 = vst.msk [vmem:[#allocation8 + $0x8] sm:$0xff] %vm429, %v1604
    // Predicated region
    $region50: #{tpu_custom_call.1} parent=1 // pred_check
      _
    $region51: #{tpu_custom_call.1} parent=1 // pred_check_branch
      %1609 = sbr.rel (0) target = $region53
    $region52: #{tpu_custom_call.1} parent=1 // pred_region
      %1611 = vsyncadd [#allocation4], 0
      %s1612 = sshll.u32 [#allocation8], 4
      %s1613 = int_to_ptr.vmem [resolvable:$true] %s1612
      %s1614 = sshll.u32 %s9, 4
      %s1615 = int_to_ptr.hbm [resolvable:$true] %s1614
      %1620 = dma.vmem_to_hbm [thread:$0]  %s1613, 256, %s1615, [#allocation4], 128, 128, 8
    $region53: #{tpu_custom_call.1} parent=1 // pred_fallthru
      _
    // Predicated region
    $region54: #{tpu_custom_call.1} parent=1 // pred_check
      _
    $region55: #{tpu_custom_call.1} parent=1 // pred_check_branch
      %1622 = sbr.rel (0) target = $region57
    $region56: #{tpu_custom_call.1} parent=1 // pred_region
      %1624 = dma.done [#allocation4], 256
    $region57: #{tpu_custom_call.1} parent=1 // pred_fallthru
      _
    %1625 = vsyncpa [#allocation3], 1
    %1626 = vsyncpa [#allocation6], 1
    %1627 = vsyncpa [#allocation4], 1

</llo_original>
